<compile_context>
chip_gen: v5e
topology: v5e:2x2
jax: 0.10.0
libtpu: 0.0.40
codegen_flags: <defaults>
</compile_context>

<pallas_src>
import functools
import math

import jax
import jax.numpy as jnp
from jax import lax
from jax.experimental import pallas as pl
from jax.experimental.pallas import tpu as pltpu


def _bconv_kernel(w_ref, xpad_ref, out_ref, *, H, W, K, Cin, Cout, Nb):
    """Shift-and-accumulate conv, one batch-block per grid step.

    w_ref    : (Cout*Cin*K*K,)          sampled weights in SMEM (scalar prefetch)
    xpad_ref : (Nb, Cin, H+K-1, W+K-1)  zero-padded NCHW input block (VMEM)
    out_ref  : (Nb, Cout, H, W)         output block (VMEM)
    """
    # Hoist all 81 SMEM scalar reads out of the per-image / per-tap loops.
    w = [[[[w_ref[((co * Cin + ci) * K + dh) * K + dw]
            for dw in range(K)]
           for dh in range(K)]
          for ci in range(Cin)]
         for co in range(Cout)]

    for n in range(Nb):
        acc = [jnp.zeros((H, W), jnp.float32) for _ in range(Cout)]
        for ci in range(Cin):
            for dh in range(K):
                for dw in range(K):
                    # Per-tap ref load: shifted (H, W) window, W on lanes.
                    win = xpad_ref[n, ci, dh:dh + H, dw:dw + W]
                    for co in range(Cout):
                        # Scalar weight from SMEM -> sreg splat FMA on the VPU.
                        acc[co] = acc[co] + win * w[co][ci][dh][dw]
        for co in range(Cout):
            out_ref[n, co] = acc[co].astype(out_ref.dtype)


def bconv_module_forward(x_nchw, W_mu, W_rho, eps, *, batch_block=None):
    """Forward pass of BConvModule (default config). Returns (output_NCHW, kl_loss)."""
    N, Cin, H, W = x_nchw.shape
    Cout, _, K, _ = W_mu.shape
    pad = K // 2
    Hp, Wp = H + 2 * pad, W + 2 * pad

    # ---- reparameterized weight sample + KL: 81 elements -> plain JAX ----
    sigma = jax.nn.softplus(W_rho)             # == log1p(exp(W_rho)), numerically stable
    weight = W_mu + eps * sigma
    prior_mu = 0.0
    prior_sigma = 1.0 / math.sqrt(3.0 * K * K)
    # calculate_kl(mu_q=prior_mu, sig_q=prior_sigma, mu_p=W_mu, sig_p=sigma)
    kl = 0.5 * (2.0 * jnp.log(sigma / prior_sigma) - 1.0
                + (prior_sigma / sigma) ** 2
                + ((W_mu - prior_mu) / sigma) ** 2).mean()

    # ---- one spatial pre-pad pass (zero halo); layout stays NCHW ----
    xpad = jnp.pad(x_nchw, ((0, 0), (0, 0), (pad, pad), (pad, pad)))

    # Fold the whole (small) batch into one grid step by default.
    Nb = N if batch_block is None else min(batch_block, N)
    assert N % Nb == 0, "batch must be divisible by batch_block"
    grid = (N // Nb,)

    kernel = functools.partial(
        _bconv_kernel, H=H, W=W, K=K, Cin=Cin, Cout=Cout, Nb=Nb)

    out = pl.pallas_call(
        kernel,
        out_shape=jax.ShapeDtypeStruct((N, Cout, H, W), x_nchw.dtype),
        grid_spec=pltpu.PrefetchScalarGridSpec(
            num_scalar_prefetch=1,                      # sampled weights -> SMEM
            grid=grid,
            in_specs=[
                pl.BlockSpec((Nb, Cin, Hp, Wp), lambda b, w_sm: (b, 0, 0, 0)),
            ],
            out_specs=pl.BlockSpec((Nb, Cout, H, W), lambda b, w_sm: (b, 0, 0, 0)),
        ),
        compiler_params=pltpu.CompilerParams(
            dimension_semantics=("parallel",)),
    )(weight.reshape(-1), xpad)

    return out, kl


if __name__ == "__main__":
    N, Cin, Cout, H, W, K = 2, 3, 3, 16, 16, 3

    key = jax.random.PRNGKey(0)
    k_x, k_mu, k_rho, k_eps = jax.random.split(key, 4)

    # Deterministic "randomize()": W_mu ~ N(0, 0.1), W_rho ~ N(-1, 0.1); no bias.
    x = jax.random.normal(k_x, (N, Cin, H, W), jnp.float32)
    W_mu = 0.0 + 0.1 * jax.random.normal(k_mu, (Cout, Cin, K, K), jnp.float32)
    W_rho = -1.0 + 0.1 * jax.random.normal(k_rho, (Cout, Cin, K, K), jnp.float32)
    eps = jax.random.normal(k_eps, (Cout, Cin, K, K), jnp.float32)

    out, kl = jax.jit(bconv_module_forward)(x, W_mu, W_rho, eps)
    out, kl = jax.block_until_ready((out, kl))

    # ---- pure-JAX reference check (mirrors the PyTorch module exactly) ----
    sigma = jax.nn.softplus(W_rho)
    weight = W_mu + eps * sigma
    ref_out = lax.conv_general_dilated(
        x, weight, window_strides=(1, 1), padding=[(K // 2, K // 2)] * 2,
        dimension_numbers=("NCHW", "OIHW", "NCHW"))

    def calculate_kl(mu_q, sig_q, mu_p, sig_p):
        return 0.5 * (2.0 * jnp.log(sig_p / sig_q) - 1.0
                      + (sig_q / sig_p) ** 2
                      + ((mu_p - mu_q) / sig_p) ** 2).mean()

    prior_sigma = 1.0 / math.sqrt(3.0 * K * K)
    ref_kl = calculate_kl(0.0, prior_sigma, W_mu, sigma)  # PyTorch argument order

    assert out.shape == (N, Cout, H, W)
    assert jnp.allclose(out, ref_out, atol=1e-3, rtol=1e-3)
    assert jnp.allclose(kl, ref_kl, atol=1e-5, rtol=1e-5)

    print("KERNEL_OK")
</pallas_src>

<mosaic_0001>
module attributes {stable_mosaic.version = 11 : i64} {
  func.func @_bconv_kernel(%arg0: i32, %arg1: memref<81xf32, #tpu.memory_space<smem>>, %arg2: memref<2x3x18x18xf32, #tpu.memory_space<vmem>>, %arg3: memref<2x3x16x16xf32, #tpu.memory_space<vmem>>) attributes {dimension_semantics = [#tpu.dimension_semantics<parallel>], iteration_bounds = array<i64: 1>, scalar_prefetch = 1 : i64, scratch_operands = 0 : i64, tpu.core_type = #tpu.core_type<tc>, window_params = [{transform_indices = @transform_0, window_bounds = array<i64: 2, 3, 18, 18>}, {transform_indices = @transform_1, window_bounds = array<i64: 2, 3, 16, 16>}]} {
    %c0 = arith.constant 0 : index
    %0 = memref.load %arg1[%c0] : memref<81xf32, #tpu.memory_space<smem>>
    %c1 = arith.constant 1 : index
    %1 = memref.load %arg1[%c1] : memref<81xf32, #tpu.memory_space<smem>>
    %c2 = arith.constant 2 : index
    %2 = memref.load %arg1[%c2] : memref<81xf32, #tpu.memory_space<smem>>
    %c3 = arith.constant 3 : index
    %3 = memref.load %arg1[%c3] : memref<81xf32, #tpu.memory_space<smem>>
    %c4 = arith.constant 4 : index
    %4 = memref.load %arg1[%c4] : memref<81xf32, #tpu.memory_space<smem>>
    %c5 = arith.constant 5 : index
    %5 = memref.load %arg1[%c5] : memref<81xf32, #tpu.memory_space<smem>>
    %c6 = arith.constant 6 : index
    %6 = memref.load %arg1[%c6] : memref<81xf32, #tpu.memory_space<smem>>
    %c7 = arith.constant 7 : index
    %7 = memref.load %arg1[%c7] : memref<81xf32, #tpu.memory_space<smem>>
    %c8 = arith.constant 8 : index
    %8 = memref.load %arg1[%c8] : memref<81xf32, #tpu.memory_space<smem>>
    %c9 = arith.constant 9 : index
    %9 = memref.load %arg1[%c9] : memref<81xf32, #tpu.memory_space<smem>>
    %c10 = arith.constant 10 : index
    %10 = memref.load %arg1[%c10] : memref<81xf32, #tpu.memory_space<smem>>
    %c11 = arith.constant 11 : index
    %11 = memref.load %arg1[%c11] : memref<81xf32, #tpu.memory_space<smem>>
    %c12 = arith.constant 12 : index
    %12 = memref.load %arg1[%c12] : memref<81xf32, #tpu.memory_space<smem>>
    %c13 = arith.constant 13 : index
    %13 = memref.load %arg1[%c13] : memref<81xf32, #tpu.memory_space<smem>>
    %c14 = arith.constant 14 : index
    %14 = memref.load %arg1[%c14] : memref<81xf32, #tpu.memory_space<smem>>
    %c15 = arith.constant 15 : index
    %15 = memref.load %arg1[%c15] : memref<81xf32, #tpu.memory_space<smem>>
    %c16 = arith.constant 16 : index
    %16 = memref.load %arg1[%c16] : memref<81xf32, #tpu.memory_space<smem>>
    %c17 = arith.constant 17 : index
    %17 = memref.load %arg1[%c17] : memref<81xf32, #tpu.memory_space<smem>>
    %c18 = arith.constant 18 : index
    %18 = memref.load %arg1[%c18] : memref<81xf32, #tpu.memory_space<smem>>
    %c19 = arith.constant 19 : index
    %19 = memref.load %arg1[%c19] : memref<81xf32, #tpu.memory_space<smem>>
    %c20 = arith.constant 20 : index
    %20 = memref.load %arg1[%c20] : memref<81xf32, #tpu.memory_space<smem>>
    %c21 = arith.constant 21 : index
    %21 = memref.load %arg1[%c21] : memref<81xf32, #tpu.memory_space<smem>>
    %c22 = arith.constant 22 : index
    %22 = memref.load %arg1[%c22] : memref<81xf32, #tpu.memory_space<smem>>
    %c23 = arith.constant 23 : index
    %23 = memref.load %arg1[%c23] : memref<81xf32, #tpu.memory_space<smem>>
    %c24 = arith.constant 24 : index
    %24 = memref.load %arg1[%c24] : memref<81xf32, #tpu.memory_space<smem>>
    %c25 = arith.constant 25 : index
    %25 = memref.load %arg1[%c25] : memref<81xf32, #tpu.memory_space<smem>>
    %c26 = arith.constant 26 : index
    %26 = memref.load %arg1[%c26] : memref<81xf32, #tpu.memory_space<smem>>
    %c27 = arith.constant 27 : index
    %27 = memref.load %arg1[%c27] : memref<81xf32, #tpu.memory_space<smem>>
    %c28 = arith.constant 28 : index
    %28 = memref.load %arg1[%c28] : memref<81xf32, #tpu.memory_space<smem>>
    %c29 = arith.constant 29 : index
    %29 = memref.load %arg1[%c29] : memref<81xf32, #tpu.memory_space<smem>>
    %c30 = arith.constant 30 : index
    %30 = memref.load %arg1[%c30] : memref<81xf32, #tpu.memory_space<smem>>
    %c31 = arith.constant 31 : index
    %31 = memref.load %arg1[%c31] : memref<81xf32, #tpu.memory_space<smem>>
    %c32 = arith.constant 32 : index
    %32 = memref.load %arg1[%c32] : memref<81xf32, #tpu.memory_space<smem>>
    %c33 = arith.constant 33 : index
    %33 = memref.load %arg1[%c33] : memref<81xf32, #tpu.memory_space<smem>>
    %c34 = arith.constant 34 : index
    %34 = memref.load %arg1[%c34] : memref<81xf32, #tpu.memory_space<smem>>
    %c35 = arith.constant 35 : index
    %35 = memref.load %arg1[%c35] : memref<81xf32, #tpu.memory_space<smem>>
    %c36 = arith.constant 36 : index
    %36 = memref.load %arg1[%c36] : memref<81xf32, #tpu.memory_space<smem>>
    %c37 = arith.constant 37 : index
    %37 = memref.load %arg1[%c37] : memref<81xf32, #tpu.memory_space<smem>>
    %c38 = arith.constant 38 : index
    %38 = memref.load %arg1[%c38] : memref<81xf32, #tpu.memory_space<smem>>
    %c39 = arith.constant 39 : index
    %39 = memref.load %arg1[%c39] : memref<81xf32, #tpu.memory_space<smem>>
    %c40 = arith.constant 40 : index
    %40 = memref.load %arg1[%c40] : memref<81xf32, #tpu.memory_space<smem>>
    %c41 = arith.constant 41 : index
    %41 = memref.load %arg1[%c41] : memref<81xf32, #tpu.memory_space<smem>>
    %c42 = arith.constant 42 : index
    %42 = memref.load %arg1[%c42] : memref<81xf32, #tpu.memory_space<smem>>
    %c43 = arith.constant 43 : index
    %43 = memref.load %arg1[%c43] : memref<81xf32, #tpu.memory_space<smem>>
    %c44 = arith.constant 44 : index
    %44 = memref.load %arg1[%c44] : memref<81xf32, #tpu.memory_space<smem>>
    %c45 = arith.constant 45 : index
    %45 = memref.load %arg1[%c45] : memref<81xf32, #tpu.memory_space<smem>>
    %c46 = arith.constant 46 : index
    %46 = memref.load %arg1[%c46] : memref<81xf32, #tpu.memory_space<smem>>
    %c47 = arith.constant 47 : index
    %47 = memref.load %arg1[%c47] : memref<81xf32, #tpu.memory_space<smem>>
    %c48 = arith.constant 48 : index
    %48 = memref.load %arg1[%c48] : memref<81xf32, #tpu.memory_space<smem>>
    %c49 = arith.constant 49 : index
    %49 = memref.load %arg1[%c49] : memref<81xf32, #tpu.memory_space<smem>>
    %c50 = arith.constant 50 : index
    %50 = memref.load %arg1[%c50] : memref<81xf32, #tpu.memory_space<smem>>
    %c51 = arith.constant 51 : index
    %51 = memref.load %arg1[%c51] : memref<81xf32, #tpu.memory_space<smem>>
    %c52 = arith.constant 52 : index
    %52 = memref.load %arg1[%c52] : memref<81xf32, #tpu.memory_space<smem>>
    %c53 = arith.constant 53 : index
    %53 = memref.load %arg1[%c53] : memref<81xf32, #tpu.memory_space<smem>>
    %c54 = arith.constant 54 : index
    %54 = memref.load %arg1[%c54] : memref<81xf32, #tpu.memory_space<smem>>
    %c55 = arith.constant 55 : index
    %55 = memref.load %arg1[%c55] : memref<81xf32, #tpu.memory_space<smem>>
    %c56 = arith.constant 56 : index
    %56 = memref.load %arg1[%c56] : memref<81xf32, #tpu.memory_space<smem>>
    %c57 = arith.constant 57 : index
    %57 = memref.load %arg1[%c57] : memref<81xf32, #tpu.memory_space<smem>>
    %c58 = arith.constant 58 : index
    %58 = memref.load %arg1[%c58] : memref<81xf32, #tpu.memory_space<smem>>
    %c59 = arith.constant 59 : index
    %59 = memref.load %arg1[%c59] : memref<81xf32, #tpu.memory_space<smem>>
    %c60 = arith.constant 60 : index
    %60 = memref.load %arg1[%c60] : memref<81xf32, #tpu.memory_space<smem>>
    %c61 = arith.constant 61 : index
    %61 = memref.load %arg1[%c61] : memref<81xf32, #tpu.memory_space<smem>>
    %c62 = arith.constant 62 : index
    %62 = memref.load %arg1[%c62] : memref<81xf32, #tpu.memory_space<smem>>
    %c63 = arith.constant 63 : index
    %63 = memref.load %arg1[%c63] : memref<81xf32, #tpu.memory_space<smem>>
    %c64 = arith.constant 64 : index
    %64 = memref.load %arg1[%c64] : memref<81xf32, #tpu.memory_space<smem>>
    %c65 = arith.constant 65 : index
    %65 = memref.load %arg1[%c65] : memref<81xf32, #tpu.memory_space<smem>>
    %c66 = arith.constant 66 : index
    %66 = memref.load %arg1[%c66] : memref<81xf32, #tpu.memory_space<smem>>
    %c67 = arith.constant 67 : index
    %67 = memref.load %arg1[%c67] : memref<81xf32, #tpu.memory_space<smem>>
    %c68 = arith.constant 68 : index
    %68 = memref.load %arg1[%c68] : memref<81xf32, #tpu.memory_space<smem>>
    %c69 = arith.constant 69 : index
    %69 = memref.load %arg1[%c69] : memref<81xf32, #tpu.memory_space<smem>>
    %c70 = arith.constant 70 : index
    %70 = memref.load %arg1[%c70] : memref<81xf32, #tpu.memory_space<smem>>
    %c71 = arith.constant 71 : index
    %71 = memref.load %arg1[%c71] : memref<81xf32, #tpu.memory_space<smem>>
    %c72 = arith.constant 72 : index
    %72 = memref.load %arg1[%c72] : memref<81xf32, #tpu.memory_space<smem>>
    %c73 = arith.constant 73 : index
    %73 = memref.load %arg1[%c73] : memref<81xf32, #tpu.memory_space<smem>>
    %c74 = arith.constant 74 : index
    %74 = memref.load %arg1[%c74] : memref<81xf32, #tpu.memory_space<smem>>
    %c75 = arith.constant 75 : index
    %75 = memref.load %arg1[%c75] : memref<81xf32, #tpu.memory_space<smem>>
    %c76 = arith.constant 76 : index
    %76 = memref.load %arg1[%c76] : memref<81xf32, #tpu.memory_space<smem>>
    %c77 = arith.constant 77 : index
    %77 = memref.load %arg1[%c77] : memref<81xf32, #tpu.memory_space<smem>>
    %c78 = arith.constant 78 : index
    %78 = memref.load %arg1[%c78] : memref<81xf32, #tpu.memory_space<smem>>
    %c79 = arith.constant 79 : index
    %79 = memref.load %arg1[%c79] : memref<81xf32, #tpu.memory_space<smem>>
    %c80 = arith.constant 80 : index
    %80 = memref.load %arg1[%c80] : memref<81xf32, #tpu.memory_space<smem>>
    %cst = arith.constant 0.000000e+00 : f32
    %81 = vector.broadcast %cst : f32 to vector<16x16xf32>
    %cst_0 = arith.constant 0.000000e+00 : f32
    %82 = vector.broadcast %cst_0 : f32 to vector<16x16xf32>
    %cst_1 = arith.constant 0.000000e+00 : f32
    %83 = vector.broadcast %cst_1 : f32 to vector<16x16xf32>
    %c0_2 = arith.constant 0 : index
    %c0_3 = arith.constant 0 : index
    %c0_4 = arith.constant 0 : index
    %c0_5 = arith.constant 0 : index
    %84 = vector.load %arg2[%c0_2, %c0_3, %c0_4, %c0_5] : memref<2x3x18x18xf32, #tpu.memory_space<vmem>>, vector<1x1x16x16xf32>
    %85 = vector.shape_cast %84 : vector<1x1x16x16xf32> to vector<16x16xf32>
    %86 = vector.broadcast %0 : f32 to vector<16x16xf32>
    %87 = arith.mulf %85, %86 : vector<16x16xf32>
    %88 = arith.addf %81, %87 : vector<16x16xf32>
    %89 = vector.broadcast %27 : f32 to vector<16x16xf32>
    %90 = arith.mulf %85, %89 : vector<16x16xf32>
    %91 = arith.addf %82, %90 : vector<16x16xf32>
    %92 = vector.broadcast %54 : f32 to vector<16x16xf32>
    %93 = arith.mulf %85, %92 : vector<16x16xf32>
    %94 = arith.addf %83, %93 : vector<16x16xf32>
    %c0_6 = arith.constant 0 : index
    %c0_7 = arith.constant 0 : index
    %c0_8 = arith.constant 0 : index
    %c1_9 = arith.constant 1 : index
    %95 = vector.load %arg2[%c0_6, %c0_7, %c0_8, %c1_9] : memref<2x3x18x18xf32, #tpu.memory_space<vmem>>, vector<1x1x16x16xf32>
    %96 = vector.shape_cast %95 : vector<1x1x16x16xf32> to vector<16x16xf32>
    %97 = vector.broadcast %1 : f32 to vector<16x16xf32>
    %98 = arith.mulf %96, %97 : vector<16x16xf32>
    %99 = arith.addf %88, %98 : vector<16x16xf32>
    %100 = vector.broadcast %28 : f32 to vector<16x16xf32>
    %101 = arith.mulf %96, %100 : vector<16x16xf32>
    %102 = arith.addf %91, %101 : vector<16x16xf32>
    %103 = vector.broadcast %55 : f32 to vector<16x16xf32>
    %104 = arith.mulf %96, %103 : vector<16x16xf32>
    %105 = arith.addf %94, %104 : vector<16x16xf32>
    %c0_10 = arith.constant 0 : index
    %c0_11 = arith.constant 0 : index
    %c0_12 = arith.constant 0 : index
    %c2_13 = arith.constant 2 : index
    %106 = vector.load %arg2[%c0_10, %c0_11, %c0_12, %c2_13] : memref<2x3x18x18xf32, #tpu.memory_space<vmem>>, vector<1x1x16x16xf32>
    %107 = vector.shape_cast %106 : vector<1x1x16x16xf32> to vector<16x16xf32>
    %108 = vector.broadcast %2 : f32 to vector<16x16xf32>
    %109 = arith.mulf %107, %108 : vector<16x16xf32>
    %110 = arith.addf %99, %109 : vector<16x16xf32>
    %111 = vector.broadcast %29 : f32 to vector<16x16xf32>
    %112 = arith.mulf %107, %111 : vector<16x16xf32>
    %113 = arith.addf %102, %112 : vector<16x16xf32>
    %114 = vector.broadcast %56 : f32 to vector<16x16xf32>
    %115 = arith.mulf %107, %114 : vector<16x16xf32>
    %116 = arith.addf %105, %115 : vector<16x16xf32>
    %c0_14 = arith.constant 0 : index
    %c0_15 = arith.constant 0 : index
    %c1_16 = arith.constant 1 : index
    %c0_17 = arith.constant 0 : index
    %117 = vector.load %arg2[%c0_14, %c0_15, %c1_16, %c0_17] : memref<2x3x18x18xf32, #tpu.memory_space<vmem>>, vector<1x1x16x16xf32>
    %118 = vector.shape_cast %117 : vector<1x1x16x16xf32> to vector<16x16xf32>
    %119 = vector.broadcast %3 : f32 to vector<16x16xf32>
    %120 = arith.mulf %118, %119 : vector<16x16xf32>
    %121 = arith.addf %110, %120 : vector<16x16xf32>
    %122 = vector.broadcast %30 : f32 to vector<16x16xf32>
    %123 = arith.mulf %118, %122 : vector<16x16xf32>
    %124 = arith.addf %113, %123 : vector<16x16xf32>
    %125 = vector.broadcast %57 : f32 to vector<16x16xf32>
    %126 = arith.mulf %118, %125 : vector<16x16xf32>
    %127 = arith.addf %116, %126 : vector<16x16xf32>
    %c0_18 = arith.constant 0 : index
    %c0_19 = arith.constant 0 : index
    %c1_20 = arith.constant 1 : index
    %c1_21 = arith.constant 1 : index
    %128 = vector.load %arg2[%c0_18, %c0_19, %c1_20, %c1_21] : memref<2x3x18x18xf32, #tpu.memory_space<vmem>>, vector<1x1x16x16xf32>
    %129 = vector.shape_cast %128 : vector<1x1x16x16xf32> to vector<16x16xf32>
    %130 = vector.broadcast %4 : f32 to vector<16x16xf32>
    %131 = arith.mulf %129, %130 : vector<16x16xf32>
    %132 = arith.addf %121, %131 : vector<16x16xf32>
    %133 = vector.broadcast %31 : f32 to vector<16x16xf32>
    %134 = arith.mulf %129, %133 : vector<16x16xf32>
    %135 = arith.addf %124, %134 : vector<16x16xf32>
    %136 = vector.broadcast %58 : f32 to vector<16x16xf32>
    %137 = arith.mulf %129, %136 : vector<16x16xf32>
    %138 = arith.addf %127, %137 : vector<16x16xf32>
    %c0_22 = arith.constant 0 : index
    %c0_23 = arith.constant 0 : index
    %c1_24 = arith.constant 1 : index
    %c2_25 = arith.constant 2 : index
    %139 = vector.load %arg2[%c0_22, %c0_23, %c1_24, %c2_25] : memref<2x3x18x18xf32, #tpu.memory_space<vmem>>, vector<1x1x16x16xf32>
    %140 = vector.shape_cast %139 : vector<1x1x16x16xf32> to vector<16x16xf32>
    %141 = vector.broadcast %5 : f32 to vector<16x16xf32>
    %142 = arith.mulf %140, %141 : vector<16x16xf32>
    %143 = arith.addf %132, %142 : vector<16x16xf32>
    %144 = vector.broadcast %32 : f32 to vector<16x16xf32>
    %145 = arith.mulf %140, %144 : vector<16x16xf32>
    %146 = arith.addf %135, %145 : vector<16x16xf32>
    %147 = vector.broadcast %59 : f32 to vector<16x16xf32>
    %148 = arith.mulf %140, %147 : vector<16x16xf32>
    %149 = arith.addf %138, %148 : vector<16x16xf32>
    %c0_26 = arith.constant 0 : index
    %c0_27 = arith.constant 0 : index
    %c2_28 = arith.constant 2 : index
    %c0_29 = arith.constant 0 : index
    %150 = vector.load %arg2[%c0_26, %c0_27, %c2_28, %c0_29] : memref<2x3x18x18xf32, #tpu.memory_space<vmem>>, vector<1x1x16x16xf32>
    %151 = vector.shape_cast %150 : vector<1x1x16x16xf32> to vector<16x16xf32>
    %152 = vector.broadcast %6 : f32 to vector<16x16xf32>
    %153 = arith.mulf %151, %152 : vector<16x16xf32>
    %154 = arith.addf %143, %153 : vector<16x16xf32>
    %155 = vector.broadcast %33 : f32 to vector<16x16xf32>
    %156 = arith.mulf %151, %155 : vector<16x16xf32>
    %157 = arith.addf %146, %156 : vector<16x16xf32>
    %158 = vector.broadcast %60 : f32 to vector<16x16xf32>
    %159 = arith.mulf %151, %158 : vector<16x16xf32>
    %160 = arith.addf %149, %159 : vector<16x16xf32>
    %c0_30 = arith.constant 0 : index
    %c0_31 = arith.constant 0 : index
    %c2_32 = arith.constant 2 : index
    %c1_33 = arith.constant 1 : index
    %161 = vector.load %arg2[%c0_30, %c0_31, %c2_32, %c1_33] : memref<2x3x18x18xf32, #tpu.memory_space<vmem>>, vector<1x1x16x16xf32>
    %162 = vector.shape_cast %161 : vector<1x1x16x16xf32> to vector<16x16xf32>
    %163 = vector.broadcast %7 : f32 to vector<16x16xf32>
    %164 = arith.mulf %162, %163 : vector<16x16xf32>
    %165 = arith.addf %154, %164 : vector<16x16xf32>
    %166 = vector.broadcast %34 : f32 to vector<16x16xf32>
    %167 = arith.mulf %162, %166 : vector<16x16xf32>
    %168 = arith.addf %157, %167 : vector<16x16xf32>
    %169 = vector.broadcast %61 : f32 to vector<16x16xf32>
    %170 = arith.mulf %162, %169 : vector<16x16xf32>
    %171 = arith.addf %160, %170 : vector<16x16xf32>
    %c0_34 = arith.constant 0 : index
    %c0_35 = arith.constant 0 : index
    %c2_36 = arith.constant 2 : index
    %c2_37 = arith.constant 2 : index
    %172 = vector.load %arg2[%c0_34, %c0_35, %c2_36, %c2_37] : memref<2x3x18x18xf32, #tpu.memory_space<vmem>>, vector<1x1x16x16xf32>
    %173 = vector.shape_cast %172 : vector<1x1x16x16xf32> to vector<16x16xf32>
    %174 = vector.broadcast %8 : f32 to vector<16x16xf32>
    %175 = arith.mulf %173, %174 : vector<16x16xf32>
    %176 = arith.addf %165, %175 : vector<16x16xf32>
    %177 = vector.broadcast %35 : f32 to vector<16x16xf32>
    %178 = arith.mulf %173, %177 : vector<16x16xf32>
    %179 = arith.addf %168, %178 : vector<16x16xf32>
    %180 = vector.broadcast %62 : f32 to vector<16x16xf32>
    %181 = arith.mulf %173, %180 : vector<16x16xf32>
    %182 = arith.addf %171, %181 : vector<16x16xf32>
    %c0_38 = arith.constant 0 : index
    %c1_39 = arith.constant 1 : index
    %c0_40 = arith.constant 0 : index
    %c0_41 = arith.constant 0 : index
    %183 = vector.load %arg2[%c0_38, %c1_39, %c0_40, %c0_41] : memref<2x3x18x18xf32, #tpu.memory_space<vmem>>, vector<1x1x16x16xf32>
    %184 = vector.shape_cast %183 : vector<1x1x16x16xf32> to vector<16x16xf32>
    %185 = vector.broadcast %9 : f32 to vector<16x16xf32>
    %186 = arith.mulf %184, %185 : vector<16x16xf32>
    %187 = arith.addf %176, %186 : vector<16x16xf32>
    %188 = vector.broadcast %36 : f32 to vector<16x16xf32>
    %189 = arith.mulf %184, %188 : vector<16x16xf32>
    %190 = arith.addf %179, %189 : vector<16x16xf32>
    %191 = vector.broadcast %63 : f32 to vector<16x16xf32>
    %192 = arith.mulf %184, %191 : vector<16x16xf32>
    %193 = arith.addf %182, %192 : vector<16x16xf32>
    %c0_42 = arith.constant 0 : index
    %c1_43 = arith.constant 1 : index
    %c0_44 = arith.constant 0 : index
    %c1_45 = arith.constant 1 : index
    %194 = vector.load %arg2[%c0_42, %c1_43, %c0_44, %c1_45] : memref<2x3x18x18xf32, #tpu.memory_space<vmem>>, vector<1x1x16x16xf32>
    %195 = vector.shape_cast %194 : vector<1x1x16x16xf32> to vector<16x16xf32>
    %196 = vector.broadcast %10 : f32 to vector<16x16xf32>
    %197 = arith.mulf %195, %196 : vector<16x16xf32>
    %198 = arith.addf %187, %197 : vector<16x16xf32>
    %199 = vector.broadcast %37 : f32 to vector<16x16xf32>
    %200 = arith.mulf %195, %199 : vector<16x16xf32>
    %201 = arith.addf %190, %200 : vector<16x16xf32>
    %202 = vector.broadcast %64 : f32 to vector<16x16xf32>
    %203 = arith.mulf %195, %202 : vector<16x16xf32>
    %204 = arith.addf %193, %203 : vector<16x16xf32>
    %c0_46 = arith.constant 0 : index
    %c1_47 = arith.constant 1 : index
    %c0_48 = arith.constant 0 : index
    %c2_49 = arith.constant 2 : index
    %205 = vector.load %arg2[%c0_46, %c1_47, %c0_48, %c2_49] : memref<2x3x18x18xf32, #tpu.memory_space<vmem>>, vector<1x1x16x16xf32>
    %206 = vector.shape_cast %205 : vector<1x1x16x16xf32> to vector<16x16xf32>
    %207 = vector.broadcast %11 : f32 to vector<16x16xf32>
    %208 = arith.mulf %206, %207 : vector<16x16xf32>
    %209 = arith.addf %198, %208 : vector<16x16xf32>
    %210 = vector.broadcast %38 : f32 to vector<16x16xf32>
    %211 = arith.mulf %206, %210 : vector<16x16xf32>
    %212 = arith.addf %201, %211 : vector<16x16xf32>
    %213 = vector.broadcast %65 : f32 to vector<16x16xf32>
    %214 = arith.mulf %206, %213 : vector<16x16xf32>
    %215 = arith.addf %204, %214 : vector<16x16xf32>
    %c0_50 = arith.constant 0 : index
    %c1_51 = arith.constant 1 : index
    %c1_52 = arith.constant 1 : index
    %c0_53 = arith.constant 0 : index
    %216 = vector.load %arg2[%c0_50, %c1_51, %c1_52, %c0_53] : memref<2x3x18x18xf32, #tpu.memory_space<vmem>>, vector<1x1x16x16xf32>
    %217 = vector.shape_cast %216 : vector<1x1x16x16xf32> to vector<16x16xf32>
    %218 = vector.broadcast %12 : f32 to vector<16x16xf32>
    %219 = arith.mulf %217, %218 : vector<16x16xf32>
    %220 = arith.addf %209, %219 : vector<16x16xf32>
    %221 = vector.broadcast %39 : f32 to vector<16x16xf32>
    %222 = arith.mulf %217, %221 : vector<16x16xf32>
    %223 = arith.addf %212, %222 : vector<16x16xf32>
    %224 = vector.broadcast %66 : f32 to vector<16x16xf32>
    %225 = arith.mulf %217, %224 : vector<16x16xf32>
    %226 = arith.addf %215, %225 : vector<16x16xf32>
    %c0_54 = arith.constant 0 : index
    %c1_55 = arith.constant 1 : index
    %c1_56 = arith.constant 1 : index
    %c1_57 = arith.constant 1 : index
    %227 = vector.load %arg2[%c0_54, %c1_55, %c1_56, %c1_57] : memref<2x3x18x18xf32, #tpu.memory_space<vmem>>, vector<1x1x16x16xf32>
    %228 = vector.shape_cast %227 : vector<1x1x16x16xf32> to vector<16x16xf32>
    %229 = vector.broadcast %13 : f32 to vector<16x16xf32>
    %230 = arith.mulf %228, %229 : vector<16x16xf32>
    %231 = arith.addf %220, %230 : vector<16x16xf32>
    %232 = vector.broadcast %40 : f32 to vector<16x16xf32>
    %233 = arith.mulf %228, %232 : vector<16x16xf32>
    %234 = arith.addf %223, %233 : vector<16x16xf32>
    %235 = vector.broadcast %67 : f32 to vector<16x16xf32>
    %236 = arith.mulf %228, %235 : vector<16x16xf32>
    %237 = arith.addf %226, %236 : vector<16x16xf32>
    %c0_58 = arith.constant 0 : index
    %c1_59 = arith.constant 1 : index
    %c1_60 = arith.constant 1 : index
    %c2_61 = arith.constant 2 : index
    %238 = vector.load %arg2[%c0_58, %c1_59, %c1_60, %c2_61] : memref<2x3x18x18xf32, #tpu.memory_space<vmem>>, vector<1x1x16x16xf32>
    %239 = vector.shape_cast %238 : vector<1x1x16x16xf32> to vector<16x16xf32>
    %240 = vector.broadcast %14 : f32 to vector<16x16xf32>
    %241 = arith.mulf %239, %240 : vector<16x16xf32>
    %242 = arith.addf %231, %241 : vector<16x16xf32>
    %243 = vector.broadcast %41 : f32 to vector<16x16xf32>
    %244 = arith.mulf %239, %243 : vector<16x16xf32>
    %245 = arith.addf %234, %244 : vector<16x16xf32>
    %246 = vector.broadcast %68 : f32 to vector<16x16xf32>
    %247 = arith.mulf %239, %246 : vector<16x16xf32>
    %248 = arith.addf %237, %247 : vector<16x16xf32>
    %c0_62 = arith.constant 0 : index
    %c1_63 = arith.constant 1 : index
    %c2_64 = arith.constant 2 : index
    %c0_65 = arith.constant 0 : index
    %249 = vector.load %arg2[%c0_62, %c1_63, %c2_64, %c0_65] : memref<2x3x18x18xf32, #tpu.memory_space<vmem>>, vector<1x1x16x16xf32>
    %250 = vector.shape_cast %249 : vector<1x1x16x16xf32> to vector<16x16xf32>
    %251 = vector.broadcast %15 : f32 to vector<16x16xf32>
    %252 = arith.mulf %250, %251 : vector<16x16xf32>
    %253 = arith.addf %242, %252 : vector<16x16xf32>
    %254 = vector.broadcast %42 : f32 to vector<16x16xf32>
    %255 = arith.mulf %250, %254 : vector<16x16xf32>
    %256 = arith.addf %245, %255 : vector<16x16xf32>
    %257 = vector.broadcast %69 : f32 to vector<16x16xf32>
    %258 = arith.mulf %250, %257 : vector<16x16xf32>
    %259 = arith.addf %248, %258 : vector<16x16xf32>
    %c0_66 = arith.constant 0 : index
    %c1_67 = arith.constant 1 : index
    %c2_68 = arith.constant 2 : index
    %c1_69 = arith.constant 1 : index
    %260 = vector.load %arg2[%c0_66, %c1_67, %c2_68, %c1_69] : memref<2x3x18x18xf32, #tpu.memory_space<vmem>>, vector<1x1x16x16xf32>
    %261 = vector.shape_cast %260 : vector<1x1x16x16xf32> to vector<16x16xf32>
    %262 = vector.broadcast %16 : f32 to vector<16x16xf32>
    %263 = arith.mulf %261, %262 : vector<16x16xf32>
    %264 = arith.addf %253, %263 : vector<16x16xf32>
    %265 = vector.broadcast %43 : f32 to vector<16x16xf32>
    %266 = arith.mulf %261, %265 : vector<16x16xf32>
    %267 = arith.addf %256, %266 : vector<16x16xf32>
    %268 = vector.broadcast %70 : f32 to vector<16x16xf32>
    %269 = arith.mulf %261, %268 : vector<16x16xf32>
    %270 = arith.addf %259, %269 : vector<16x16xf32>
    %c0_70 = arith.constant 0 : index
    %c1_71 = arith.constant 1 : index
    %c2_72 = arith.constant 2 : index
    %c2_73 = arith.constant 2 : index
    %271 = vector.load %arg2[%c0_70, %c1_71, %c2_72, %c2_73] : memref<2x3x18x18xf32, #tpu.memory_space<vmem>>, vector<1x1x16x16xf32>
    %272 = vector.shape_cast %271 : vector<1x1x16x16xf32> to vector<16x16xf32>
    %273 = vector.broadcast %17 : f32 to vector<16x16xf32>
    %274 = arith.mulf %272, %273 : vector<16x16xf32>
    %275 = arith.addf %264, %274 : vector<16x16xf32>
    %276 = vector.broadcast %44 : f32 to vector<16x16xf32>
    %277 = arith.mulf %272, %276 : vector<16x16xf32>
    %278 = arith.addf %267, %277 : vector<16x16xf32>
    %279 = vector.broadcast %71 : f32 to vector<16x16xf32>
    %280 = arith.mulf %272, %279 : vector<16x16xf32>
    %281 = arith.addf %270, %280 : vector<16x16xf32>
    %c0_74 = arith.constant 0 : index
    %c2_75 = arith.constant 2 : index
    %c0_76 = arith.constant 0 : index
    %c0_77 = arith.constant 0 : index
    %282 = vector.load %arg2[%c0_74, %c2_75, %c0_76, %c0_77] : memref<2x3x18x18xf32, #tpu.memory_space<vmem>>, vector<1x1x16x16xf32>
    %283 = vector.shape_cast %282 : vector<1x1x16x16xf32> to vector<16x16xf32>
    %284 = vector.broadcast %18 : f32 to vector<16x16xf32>
    %285 = arith.mulf %283, %284 : vector<16x16xf32>
    %286 = arith.addf %275, %285 : vector<16x16xf32>
    %287 = vector.broadcast %45 : f32 to vector<16x16xf32>
    %288 = arith.mulf %283, %287 : vector<16x16xf32>
    %289 = arith.addf %278, %288 : vector<16x16xf32>
    %290 = vector.broadcast %72 : f32 to vector<16x16xf32>
    %291 = arith.mulf %283, %290 : vector<16x16xf32>
    %292 = arith.addf %281, %291 : vector<16x16xf32>
    %c0_78 = arith.constant 0 : index
    %c2_79 = arith.constant 2 : index
    %c0_80 = arith.constant 0 : index
    %c1_81 = arith.constant 1 : index
    %293 = vector.load %arg2[%c0_78, %c2_79, %c0_80, %c1_81] : memref<2x3x18x18xf32, #tpu.memory_space<vmem>>, vector<1x1x16x16xf32>
    %294 = vector.shape_cast %293 : vector<1x1x16x16xf32> to vector<16x16xf32>
    %295 = vector.broadcast %19 : f32 to vector<16x16xf32>
    %296 = arith.mulf %294, %295 : vector<16x16xf32>
    %297 = arith.addf %286, %296 : vector<16x16xf32>
    %298 = vector.broadcast %46 : f32 to vector<16x16xf32>
    %299 = arith.mulf %294, %298 : vector<16x16xf32>
    %300 = arith.addf %289, %299 : vector<16x16xf32>
    %301 = vector.broadcast %73 : f32 to vector<16x16xf32>
    %302 = arith.mulf %294, %301 : vector<16x16xf32>
    %303 = arith.addf %292, %302 : vector<16x16xf32>
    %c0_82 = arith.constant 0 : index
    %c2_83 = arith.constant 2 : index
    %c0_84 = arith.constant 0 : index
    %c2_85 = arith.constant 2 : index
    %304 = vector.load %arg2[%c0_82, %c2_83, %c0_84, %c2_85] : memref<2x3x18x18xf32, #tpu.memory_space<vmem>>, vector<1x1x16x16xf32>
    %305 = vector.shape_cast %304 : vector<1x1x16x16xf32> to vector<16x16xf32>
    %306 = vector.broadcast %20 : f32 to vector<16x16xf32>
    %307 = arith.mulf %305, %306 : vector<16x16xf32>
    %308 = arith.addf %297, %307 : vector<16x16xf32>
    %309 = vector.broadcast %47 : f32 to vector<16x16xf32>
    %310 = arith.mulf %305, %309 : vector<16x16xf32>
    %311 = arith.addf %300, %310 : vector<16x16xf32>
    %312 = vector.broadcast %74 : f32 to vector<16x16xf32>
    %313 = arith.mulf %305, %312 : vector<16x16xf32>
    %314 = arith.addf %303, %313 : vector<16x16xf32>
    %c0_86 = arith.constant 0 : index
    %c2_87 = arith.constant 2 : index
    %c1_88 = arith.constant 1 : index
    %c0_89 = arith.constant 0 : index
    %315 = vector.load %arg2[%c0_86, %c2_87, %c1_88, %c0_89] : memref<2x3x18x18xf32, #tpu.memory_space<vmem>>, vector<1x1x16x16xf32>
    %316 = vector.shape_cast %315 : vector<1x1x16x16xf32> to vector<16x16xf32>
    %317 = vector.broadcast %21 : f32 to vector<16x16xf32>
    %318 = arith.mulf %316, %317 : vector<16x16xf32>
    %319 = arith.addf %308, %318 : vector<16x16xf32>
    %320 = vector.broadcast %48 : f32 to vector<16x16xf32>
    %321 = arith.mulf %316, %320 : vector<16x16xf32>
    %322 = arith.addf %311, %321 : vector<16x16xf32>
    %323 = vector.broadcast %75 : f32 to vector<16x16xf32>
    %324 = arith.mulf %316, %323 : vector<16x16xf32>
    %325 = arith.addf %314, %324 : vector<16x16xf32>
    %c0_90 = arith.constant 0 : index
    %c2_91 = arith.constant 2 : index
    %c1_92 = arith.constant 1 : index
    %c1_93 = arith.constant 1 : index
    %326 = vector.load %arg2[%c0_90, %c2_91, %c1_92, %c1_93] : memref<2x3x18x18xf32, #tpu.memory_space<vmem>>, vector<1x1x16x16xf32>
    %327 = vector.shape_cast %326 : vector<1x1x16x16xf32> to vector<16x16xf32>
    %328 = vector.broadcast %22 : f32 to vector<16x16xf32>
    %329 = arith.mulf %327, %328 : vector<16x16xf32>
    %330 = arith.addf %319, %329 : vector<16x16xf32>
    %331 = vector.broadcast %49 : f32 to vector<16x16xf32>
    %332 = arith.mulf %327, %331 : vector<16x16xf32>
    %333 = arith.addf %322, %332 : vector<16x16xf32>
    %334 = vector.broadcast %76 : f32 to vector<16x16xf32>
    %335 = arith.mulf %327, %334 : vector<16x16xf32>
    %336 = arith.addf %325, %335 : vector<16x16xf32>
    %c0_94 = arith.constant 0 : index
    %c2_95 = arith.constant 2 : index
    %c1_96 = arith.constant 1 : index
    %c2_97 = arith.constant 2 : index
    %337 = vector.load %arg2[%c0_94, %c2_95, %c1_96, %c2_97] : memref<2x3x18x18xf32, #tpu.memory_space<vmem>>, vector<1x1x16x16xf32>
    %338 = vector.shape_cast %337 : vector<1x1x16x16xf32> to vector<16x16xf32>
    %339 = vector.broadcast %23 : f32 to vector<16x16xf32>
    %340 = arith.mulf %338, %339 : vector<16x16xf32>
    %341 = arith.addf %330, %340 : vector<16x16xf32>
    %342 = vector.broadcast %50 : f32 to vector<16x16xf32>
    %343 = arith.mulf %338, %342 : vector<16x16xf32>
    %344 = arith.addf %333, %343 : vector<16x16xf32>
    %345 = vector.broadcast %77 : f32 to vector<16x16xf32>
    %346 = arith.mulf %338, %345 : vector<16x16xf32>
    %347 = arith.addf %336, %346 : vector<16x16xf32>
    %c0_98 = arith.constant 0 : index
    %c2_99 = arith.constant 2 : index
    %c2_100 = arith.constant 2 : index
    %c0_101 = arith.constant 0 : index
    %348 = vector.load %arg2[%c0_98, %c2_99, %c2_100, %c0_101] : memref<2x3x18x18xf32, #tpu.memory_space<vmem>>, vector<1x1x16x16xf32>
    %349 = vector.shape_cast %348 : vector<1x1x16x16xf32> to vector<16x16xf32>
    %350 = vector.broadcast %24 : f32 to vector<16x16xf32>
    %351 = arith.mulf %349, %350 : vector<16x16xf32>
    %352 = arith.addf %341, %351 : vector<16x16xf32>
    %353 = vector.broadcast %51 : f32 to vector<16x16xf32>
    %354 = arith.mulf %349, %353 : vector<16x16xf32>
    %355 = arith.addf %344, %354 : vector<16x16xf32>
    %356 = vector.broadcast %78 : f32 to vector<16x16xf32>
    %357 = arith.mulf %349, %356 : vector<16x16xf32>
    %358 = arith.addf %347, %357 : vector<16x16xf32>
    %c0_102 = arith.constant 0 : index
    %c2_103 = arith.constant 2 : index
    %c2_104 = arith.constant 2 : index
    %c1_105 = arith.constant 1 : index
    %359 = vector.load %arg2[%c0_102, %c2_103, %c2_104, %c1_105] : memref<2x3x18x18xf32, #tpu.memory_space<vmem>>, vector<1x1x16x16xf32>
    %360 = vector.shape_cast %359 : vector<1x1x16x16xf32> to vector<16x16xf32>
    %361 = vector.broadcast %25 : f32 to vector<16x16xf32>
    %362 = arith.mulf %360, %361 : vector<16x16xf32>
    %363 = arith.addf %352, %362 : vector<16x16xf32>
    %364 = vector.broadcast %52 : f32 to vector<16x16xf32>
    %365 = arith.mulf %360, %364 : vector<16x16xf32>
    %366 = arith.addf %355, %365 : vector<16x16xf32>
    %367 = vector.broadcast %79 : f32 to vector<16x16xf32>
    %368 = arith.mulf %360, %367 : vector<16x16xf32>
    %369 = arith.addf %358, %368 : vector<16x16xf32>
    %c0_106 = arith.constant 0 : index
    %c2_107 = arith.constant 2 : index
    %c2_108 = arith.constant 2 : index
    %c2_109 = arith.constant 2 : index
    %370 = vector.load %arg2[%c0_106, %c2_107, %c2_108, %c2_109] : memref<2x3x18x18xf32, #tpu.memory_space<vmem>>, vector<1x1x16x16xf32>
    %371 = vector.shape_cast %370 : vector<1x1x16x16xf32> to vector<16x16xf32>
    %372 = vector.broadcast %26 : f32 to vector<16x16xf32>
    %373 = arith.mulf %371, %372 : vector<16x16xf32>
    %374 = arith.addf %363, %373 : vector<16x16xf32>
    %375 = vector.broadcast %53 : f32 to vector<16x16xf32>
    %376 = arith.mulf %371, %375 : vector<16x16xf32>
    %377 = arith.addf %366, %376 : vector<16x16xf32>
    %378 = vector.broadcast %80 : f32 to vector<16x16xf32>
    %379 = arith.mulf %371, %378 : vector<16x16xf32>
    %380 = arith.addf %369, %379 : vector<16x16xf32>
    %c0_110 = arith.constant 0 : index
    %c0_111 = arith.constant 0 : index
    %c0_112 = arith.constant 0 : index
    %c0_113 = arith.constant 0 : index
    %381 = vector.load %arg3[%c0_110, %c0_111, %c0_112, %c0_113] : memref<2x3x16x16xf32, #tpu.memory_space<vmem>>, vector<1x1x16x16xf32>
    %382 = vector.shape_cast %381 : vector<1x1x16x16xf32> to vector<16x16xf32>
    %383 = vector.shape_cast %374 : vector<16x16xf32> to vector<1x1x16x16xf32>
    tpu.vector_store %arg3[%c0_110, %c0_111, %c0_112, %c0_113], %383 {strides = array<i32>} : memref<2x3x16x16xf32, #tpu.memory_space<vmem>>, vector<1x1x16x16xf32>,
    %c0_114 = arith.constant 0 : index
    %c1_115 = arith.constant 1 : index
    %c0_116 = arith.constant 0 : index
    %c0_117 = arith.constant 0 : index
    %384 = vector.load %arg3[%c0_114, %c1_115, %c0_116, %c0_117] : memref<2x3x16x16xf32, #tpu.memory_space<vmem>>, vector<1x1x16x16xf32>
    %385 = vector.shape_cast %384 : vector<1x1x16x16xf32> to vector<16x16xf32>
    %386 = vector.shape_cast %377 : vector<16x16xf32> to vector<1x1x16x16xf32>
    tpu.vector_store %arg3[%c0_114, %c1_115, %c0_116, %c0_117], %386 {strides = array<i32>} : memref<2x3x16x16xf32, #tpu.memory_space<vmem>>, vector<1x1x16x16xf32>,
    %c0_118 = arith.constant 0 : index
    %c2_119 = arith.constant 2 : index
    %c0_120 = arith.constant 0 : index
    %c0_121 = arith.constant 0 : index
    %387 = vector.load %arg3[%c0_118, %c2_119, %c0_120, %c0_121] : memref<2x3x16x16xf32, #tpu.memory_space<vmem>>, vector<1x1x16x16xf32>
    %388 = vector.shape_cast %387 : vector<1x1x16x16xf32> to vector<16x16xf32>
    %389 = vector.shape_cast %380 : vector<16x16xf32> to vector<1x1x16x16xf32>
    tpu.vector_store %arg3[%c0_118, %c2_119, %c0_120, %c0_121], %389 {strides = array<i32>} : memref<2x3x16x16xf32, #tpu.memory_space<vmem>>, vector<1x1x16x16xf32>,
    %cst_122 = arith.constant 0.000000e+00 : f32
    %390 = vector.broadcast %cst_122 : f32 to vector<16x16xf32>
    %cst_123 = arith.constant 0.000000e+00 : f32
    %391 = vector.broadcast %cst_123 : f32 to vector<16x16xf32>
    %cst_124 = arith.constant 0.000000e+00 : f32
    %392 = vector.broadcast %cst_124 : f32 to vector<16x16xf32>
    %c1_125 = arith.constant 1 : index
    %c0_126 = arith.constant 0 : index
    %c0_127 = arith.constant 0 : index
    %c0_128 = arith.constant 0 : index
    %393 = vector.load %arg2[%c1_125, %c0_126, %c0_127, %c0_128] : memref<2x3x18x18xf32, #tpu.memory_space<vmem>>, vector<1x1x16x16xf32>
    %394 = vector.shape_cast %393 : vector<1x1x16x16xf32> to vector<16x16xf32>
    %395 = vector.broadcast %0 : f32 to vector<16x16xf32>
    %396 = arith.mulf %394, %395 : vector<16x16xf32>
    %397 = arith.addf %390, %396 : vector<16x16xf32>
    %398 = vector.broadcast %27 : f32 to vector<16x16xf32>
    %399 = arith.mulf %394, %398 : vector<16x16xf32>
    %400 = arith.addf %391, %399 : vector<16x16xf32>
    %401 = vector.broadcast %54 : f32 to vector<16x16xf32>
    %402 = arith.mulf %394, %401 : vector<16x16xf32>
    %403 = arith.addf %392, %402 : vector<16x16xf32>
    %c1_129 = arith.constant 1 : index
    %c0_130 = arith.constant 0 : index
    %c0_131 = arith.constant 0 : index
    %c1_132 = arith.constant 1 : index
    %404 = vector.load %arg2[%c1_129, %c0_130, %c0_131, %c1_132] : memref<2x3x18x18xf32, #tpu.memory_space<vmem>>, vector<1x1x16x16xf32>
    %405 = vector.shape_cast %404 : vector<1x1x16x16xf32> to vector<16x16xf32>
    %406 = vector.broadcast %1 : f32 to vector<16x16xf32>
    %407 = arith.mulf %405, %406 : vector<16x16xf32>
    %408 = arith.addf %397, %407 : vector<16x16xf32>
    %409 = vector.broadcast %28 : f32 to vector<16x16xf32>
    %410 = arith.mulf %405, %409 : vector<16x16xf32>
    %411 = arith.addf %400, %410 : vector<16x16xf32>
    %412 = vector.broadcast %55 : f32 to vector<16x16xf32>
    %413 = arith.mulf %405, %412 : vector<16x16xf32>
    %414 = arith.addf %403, %413 : vector<16x16xf32>
    %c1_133 = arith.constant 1 : index
    %c0_134 = arith.constant 0 : index
    %c0_135 = arith.constant 0 : index
    %c2_136 = arith.constant 2 : index
    %415 = vector.load %arg2[%c1_133, %c0_134, %c0_135, %c2_136] : memref<2x3x18x18xf32, #tpu.memory_space<vmem>>, vector<1x1x16x16xf32>
    %416 = vector.shape_cast %415 : vector<1x1x16x16xf32> to vector<16x16xf32>
    %417 = vector.broadcast %2 : f32 to vector<16x16xf32>
    %418 = arith.mulf %416, %417 : vector<16x16xf32>
    %419 = arith.addf %408, %418 : vector<16x16xf32>
    %420 = vector.broadcast %29 : f32 to vector<16x16xf32>
    %421 = arith.mulf %416, %420 : vector<16x16xf32>
    %422 = arith.addf %411, %421 : vector<16x16xf32>
    %423 = vector.broadcast %56 : f32 to vector<16x16xf32>
    %424 = arith.mulf %416, %423 : vector<16x16xf32>
    %425 = arith.addf %414, %424 : vector<16x16xf32>
    %c1_137 = arith.constant 1 : index
    %c0_138 = arith.constant 0 : index
    %c1_139 = arith.constant 1 : index
    %c0_140 = arith.constant 0 : index
    %426 = vector.load %arg2[%c1_137, %c0_138, %c1_139, %c0_140] : memref<2x3x18x18xf32, #tpu.memory_space<vmem>>, vector<1x1x16x16xf32>
    %427 = vector.shape_cast %426 : vector<1x1x16x16xf32> to vector<16x16xf32>
    %428 = vector.broadcast %3 : f32 to vector<16x16xf32>
    %429 = arith.mulf %427, %428 : vector<16x16xf32>
    %430 = arith.addf %419, %429 : vector<16x16xf32>
    %431 = vector.broadcast %30 : f32 to vector<16x16xf32>
    %432 = arith.mulf %427, %431 : vector<16x16xf32>
    %433 = arith.addf %422, %432 : vector<16x16xf32>
    %434 = vector.broadcast %57 : f32 to vector<16x16xf32>
    %435 = arith.mulf %427, %434 : vector<16x16xf32>
    %436 = arith.addf %425, %435 : vector<16x16xf32>
    %c1_141 = arith.constant 1 : index
    %c0_142 = arith.constant 0 : index
    %c1_143 = arith.constant 1 : index
    %c1_144 = arith.constant 1 : index
    %437 = vector.load %arg2[%c1_141, %c0_142, %c1_143, %c1_144] : memref<2x3x18x18xf32, #tpu.memory_space<vmem>>, vector<1x1x16x16xf32>
    %438 = vector.shape_cast %437 : vector<1x1x16x16xf32> to vector<16x16xf32>
    %439 = vector.broadcast %4 : f32 to vector<16x16xf32>
    %440 = arith.mulf %438, %439 : vector<16x16xf32>
    %441 = arith.addf %430, %440 : vector<16x16xf32>
    %442 = vector.broadcast %31 : f32 to vector<16x16xf32>
    %443 = arith.mulf %438, %442 : vector<16x16xf32>
    %444 = arith.addf %433, %443 : vector<16x16xf32>
    %445 = vector.broadcast %58 : f32 to vector<16x16xf32>
    %446 = arith.mulf %438, %445 : vector<16x16xf32>
    %447 = arith.addf %436, %446 : vector<16x16xf32>
    %c1_145 = arith.constant 1 : index
    %c0_146 = arith.constant 0 : index
    %c1_147 = arith.constant 1 : index
    %c2_148 = arith.constant 2 : index
    %448 = vector.load %arg2[%c1_145, %c0_146, %c1_147, %c2_148] : memref<2x3x18x18xf32, #tpu.memory_space<vmem>>, vector<1x1x16x16xf32>
    %449 = vector.shape_cast %448 : vector<1x1x16x16xf32> to vector<16x16xf32>
    %450 = vector.broadcast %5 : f32 to vector<16x16xf32>
    %451 = arith.mulf %449, %450 : vector<16x16xf32>
    %452 = arith.addf %441, %451 : vector<16x16xf32>
    %453 = vector.broadcast %32 : f32 to vector<16x16xf32>
    %454 = arith.mulf %449, %453 : vector<16x16xf32>
    %455 = arith.addf %444, %454 : vector<16x16xf32>
    %456 = vector.broadcast %59 : f32 to vector<16x16xf32>
    %457 = arith.mulf %449, %456 : vector<16x16xf32>
    %458 = arith.addf %447, %457 : vector<16x16xf32>
    %c1_149 = arith.constant 1 : index
    %c0_150 = arith.constant 0 : index
    %c2_151 = arith.constant 2 : index
    %c0_152 = arith.constant 0 : index
    %459 = vector.load %arg2[%c1_149, %c0_150, %c2_151, %c0_152] : memref<2x3x18x18xf32, #tpu.memory_space<vmem>>, vector<1x1x16x16xf32>
    %460 = vector.shape_cast %459 : vector<1x1x16x16xf32> to vector<16x16xf32>
    %461 = vector.broadcast %6 : f32 to vector<16x16xf32>
    %462 = arith.mulf %460, %461 : vector<16x16xf32>
    %463 = arith.addf %452, %462 : vector<16x16xf32>
    %464 = vector.broadcast %33 : f32 to vector<16x16xf32>
    %465 = arith.mulf %460, %464 : vector<16x16xf32>
    %466 = arith.addf %455, %465 : vector<16x16xf32>
    %467 = vector.broadcast %60 : f32 to vector<16x16xf32>
    %468 = arith.mulf %460, %467 : vector<16x16xf32>
    %469 = arith.addf %458, %468 : vector<16x16xf32>
    %c1_153 = arith.constant 1 : index
    %c0_154 = arith.constant 0 : index
    %c2_155 = arith.constant 2 : index
    %c1_156 = arith.constant 1 : index
    %470 = vector.load %arg2[%c1_153, %c0_154, %c2_155, %c1_156] : memref<2x3x18x18xf32, #tpu.memory_space<vmem>>, vector<1x1x16x16xf32>
    %471 = vector.shape_cast %470 : vector<1x1x16x16xf32> to vector<16x16xf32>
    %472 = vector.broadcast %7 : f32 to vector<16x16xf32>
    %473 = arith.mulf %471, %472 : vector<16x16xf32>
    %474 = arith.addf %463, %473 : vector<16x16xf32>
    %475 = vector.broadcast %34 : f32 to vector<16x16xf32>
    %476 = arith.mulf %471, %475 : vector<16x16xf32>
    %477 = arith.addf %466, %476 : vector<16x16xf32>
    %478 = vector.broadcast %61 : f32 to vector<16x16xf32>
    %479 = arith.mulf %471, %478 : vector<16x16xf32>
    %480 = arith.addf %469, %479 : vector<16x16xf32>
    %c1_157 = arith.constant 1 : index
    %c0_158 = arith.constant 0 : index
    %c2_159 = arith.constant 2 : index
    %c2_160 = arith.constant 2 : index
    %481 = vector.load %arg2[%c1_157, %c0_158, %c2_159, %c2_160] : memref<2x3x18x18xf32, #tpu.memory_space<vmem>>, vector<1x1x16x16xf32>
    %482 = vector.shape_cast %481 : vector<1x1x16x16xf32> to vector<16x16xf32>
    %483 = vector.broadcast %8 : f32 to vector<16x16xf32>
    %484 = arith.mulf %482, %483 : vector<16x16xf32>
    %485 = arith.addf %474, %484 : vector<16x16xf32>
    %486 = vector.broadcast %35 : f32 to vector<16x16xf32>
    %487 = arith.mulf %482, %486 : vector<16x16xf32>
    %488 = arith.addf %477, %487 : vector<16x16xf32>
    %489 = vector.broadcast %62 : f32 to vector<16x16xf32>
    %490 = arith.mulf %482, %489 : vector<16x16xf32>
    %491 = arith.addf %480, %490 : vector<16x16xf32>
    %c1_161 = arith.constant 1 : index
    %c1_162 = arith.constant 1 : index
    %c0_163 = arith.constant 0 : index
    %c0_164 = arith.constant 0 : index
    %492 = vector.load %arg2[%c1_161, %c1_162, %c0_163, %c0_164] : memref<2x3x18x18xf32, #tpu.memory_space<vmem>>, vector<1x1x16x16xf32>
    %493 = vector.shape_cast %492 : vector<1x1x16x16xf32> to vector<16x16xf32>
    %494 = vector.broadcast %9 : f32 to vector<16x16xf32>
    %495 = arith.mulf %493, %494 : vector<16x16xf32>
    %496 = arith.addf %485, %495 : vector<16x16xf32>
    %497 = vector.broadcast %36 : f32 to vector<16x16xf32>
    %498 = arith.mulf %493, %497 : vector<16x16xf32>
    %499 = arith.addf %488, %498 : vector<16x16xf32>
    %500 = vector.broadcast %63 : f32 to vector<16x16xf32>
    %501 = arith.mulf %493, %500 : vector<16x16xf32>
    %502 = arith.addf %491, %501 : vector<16x16xf32>
    %c1_165 = arith.constant 1 : index
    %c1_166 = arith.constant 1 : index
    %c0_167 = arith.constant 0 : index
    %c1_168 = arith.constant 1 : index
    %503 = vector.load %arg2[%c1_165, %c1_166, %c0_167, %c1_168] : memref<2x3x18x18xf32, #tpu.memory_space<vmem>>, vector<1x1x16x16xf32>
    %504 = vector.shape_cast %503 : vector<1x1x16x16xf32> to vector<16x16xf32>
    %505 = vector.broadcast %10 : f32 to vector<16x16xf32>
    %506 = arith.mulf %504, %505 : vector<16x16xf32>
    %507 = arith.addf %496, %506 : vector<16x16xf32>
    %508 = vector.broadcast %37 : f32 to vector<16x16xf32>
    %509 = arith.mulf %504, %508 : vector<16x16xf32>
    %510 = arith.addf %499, %509 : vector<16x16xf32>
    %511 = vector.broadcast %64 : f32 to vector<16x16xf32>
    %512 = arith.mulf %504, %511 : vector<16x16xf32>
    %513 = arith.addf %502, %512 : vector<16x16xf32>
    %c1_169 = arith.constant 1 : index
    %c1_170 = arith.constant 1 : index
    %c0_171 = arith.constant 0 : index
    %c2_172 = arith.constant 2 : index
    %514 = vector.load %arg2[%c1_169, %c1_170, %c0_171, %c2_172] : memref<2x3x18x18xf32, #tpu.memory_space<vmem>>, vector<1x1x16x16xf32>
    %515 = vector.shape_cast %514 : vector<1x1x16x16xf32> to vector<16x16xf32>
    %516 = vector.broadcast %11 : f32 to vector<16x16xf32>
    %517 = arith.mulf %515, %516 : vector<16x16xf32>
    %518 = arith.addf %507, %517 : vector<16x16xf32>
    %519 = vector.broadcast %38 : f32 to vector<16x16xf32>
    %520 = arith.mulf %515, %519 : vector<16x16xf32>
    %521 = arith.addf %510, %520 : vector<16x16xf32>
    %522 = vector.broadcast %65 : f32 to vector<16x16xf32>
    %523 = arith.mulf %515, %522 : vector<16x16xf32>
    %524 = arith.addf %513, %523 : vector<16x16xf32>
    %c1_173 = arith.constant 1 : index
    %c1_174 = arith.constant 1 : index
    %c1_175 = arith.constant 1 : index
    %c0_176 = arith.constant 0 : index
    %525 = vector.load %arg2[%c1_173, %c1_174, %c1_175, %c0_176] : memref<2x3x18x18xf32, #tpu.memory_space<vmem>>, vector<1x1x16x16xf32>
    %526 = vector.shape_cast %525 : vector<1x1x16x16xf32> to vector<16x16xf32>
    %527 = vector.broadcast %12 : f32 to vector<16x16xf32>
    %528 = arith.mulf %526, %527 : vector<16x16xf32>
    %529 = arith.addf %518, %528 : vector<16x16xf32>
    %530 = vector.broadcast %39 : f32 to vector<16x16xf32>
    %531 = arith.mulf %526, %530 : vector<16x16xf32>
    %532 = arith.addf %521, %531 : vector<16x16xf32>
    %533 = vector.broadcast %66 : f32 to vector<16x16xf32>
    %534 = arith.mulf %526, %533 : vector<16x16xf32>
    %535 = arith.addf %524, %534 : vector<16x16xf32>
    %c1_177 = arith.constant 1 : index
    %c1_178 = arith.constant 1 : index
    %c1_179 = arith.constant 1 : index
    %c1_180 = arith.constant 1 : index
    %536 = vector.load %arg2[%c1_177, %c1_178, %c1_179, %c1_180] : memref<2x3x18x18xf32, #tpu.memory_space<vmem>>, vector<1x1x16x16xf32>
    %537 = vector.shape_cast %536 : vector<1x1x16x16xf32> to vector<16x16xf32>
    %538 = vector.broadcast %13 : f32 to vector<16x16xf32>
    %539 = arith.mulf %537, %538 : vector<16x16xf32>
    %540 = arith.addf %529, %539 : vector<16x16xf32>
    %541 = vector.broadcast %40 : f32 to vector<16x16xf32>
    %542 = arith.mulf %537, %541 : vector<16x16xf32>
    %543 = arith.addf %532, %542 : vector<16x16xf32>
    %544 = vector.broadcast %67 : f32 to vector<16x16xf32>
    %545 = arith.mulf %537, %544 : vector<16x16xf32>
    %546 = arith.addf %535, %545 : vector<16x16xf32>
    %c1_181 = arith.constant 1 : index
    %c1_182 = arith.constant 1 : index
    %c1_183 = arith.constant 1 : index
    %c2_184 = arith.constant 2 : index
    %547 = vector.load %arg2[%c1_181, %c1_182, %c1_183, %c2_184] : memref<2x3x18x18xf32, #tpu.memory_space<vmem>>, vector<1x1x16x16xf32>
    %548 = vector.shape_cast %547 : vector<1x1x16x16xf32> to vector<16x16xf32>
    %549 = vector.broadcast %14 : f32 to vector<16x16xf32>
    %550 = arith.mulf %548, %549 : vector<16x16xf32>
    %551 = arith.addf %540, %550 : vector<16x16xf32>
    %552 = vector.broadcast %41 : f32 to vector<16x16xf32>
    %553 = arith.mulf %548, %552 : vector<16x16xf32>
    %554 = arith.addf %543, %553 : vector<16x16xf32>
    %555 = vector.broadcast %68 : f32 to vector<16x16xf32>
    %556 = arith.mulf %548, %555 : vector<16x16xf32>
    %557 = arith.addf %546, %556 : vector<16x16xf32>
    %c1_185 = arith.constant 1 : index
    %c1_186 = arith.constant 1 : index
    %c2_187 = arith.constant 2 : index
    %c0_188 = arith.constant 0 : index
    %558 = vector.load %arg2[%c1_185, %c1_186, %c2_187, %c0_188] : memref<2x3x18x18xf32, #tpu.memory_space<vmem>>, vector<1x1x16x16xf32>
    %559 = vector.shape_cast %558 : vector<1x1x16x16xf32> to vector<16x16xf32>
    %560 = vector.broadcast %15 : f32 to vector<16x16xf32>
    %561 = arith.mulf %559, %560 : vector<16x16xf32>
    %562 = arith.addf %551, %561 : vector<16x16xf32>
    %563 = vector.broadcast %42 : f32 to vector<16x16xf32>
    %564 = arith.mulf %559, %563 : vector<16x16xf32>
    %565 = arith.addf %554, %564 : vector<16x16xf32>
    %566 = vector.broadcast %69 : f32 to vector<16x16xf32>
    %567 = arith.mulf %559, %566 : vector<16x16xf32>
    %568 = arith.addf %557, %567 : vector<16x16xf32>
    %c1_189 = arith.constant 1 : index
    %c1_190 = arith.constant 1 : index
    %c2_191 = arith.constant 2 : index
    %c1_192 = arith.constant 1 : index
    %569 = vector.load %arg2[%c1_189, %c1_190, %c2_191, %c1_192] : memref<2x3x18x18xf32, #tpu.memory_space<vmem>>, vector<1x1x16x16xf32>
    %570 = vector.shape_cast %569 : vector<1x1x16x16xf32> to vector<16x16xf32>
    %571 = vector.broadcast %16 : f32 to vector<16x16xf32>
    %572 = arith.mulf %570, %571 : vector<16x16xf32>
    %573 = arith.addf %562, %572 : vector<16x16xf32>
    %574 = vector.broadcast %43 : f32 to vector<16x16xf32>
    %575 = arith.mulf %570, %574 : vector<16x16xf32>
    %576 = arith.addf %565, %575 : vector<16x16xf32>
    %577 = vector.broadcast %70 : f32 to vector<16x16xf32>
    %578 = arith.mulf %570, %577 : vector<16x16xf32>
    %579 = arith.addf %568, %578 : vector<16x16xf32>
    %c1_193 = arith.constant 1 : index
    %c1_194 = arith.constant 1 : index
    %c2_195 = arith.constant 2 : index
    %c2_196 = arith.constant 2 : index
    %580 = vector.load %arg2[%c1_193, %c1_194, %c2_195, %c2_196] : memref<2x3x18x18xf32, #tpu.memory_space<vmem>>, vector<1x1x16x16xf32>
    %581 = vector.shape_cast %580 : vector<1x1x16x16xf32> to vector<16x16xf32>
    %582 = vector.broadcast %17 : f32 to vector<16x16xf32>
    %583 = arith.mulf %581, %582 : vector<16x16xf32>
    %584 = arith.addf %573, %583 : vector<16x16xf32>
    %585 = vector.broadcast %44 : f32 to vector<16x16xf32>
    %586 = arith.mulf %581, %585 : vector<16x16xf32>
    %587 = arith.addf %576, %586 : vector<16x16xf32>
    %588 = vector.broadcast %71 : f32 to vector<16x16xf32>
    %589 = arith.mulf %581, %588 : vector<16x16xf32>
    %590 = arith.addf %579, %589 : vector<16x16xf32>
    %c1_197 = arith.constant 1 : index
    %c2_198 = arith.constant 2 : index
    %c0_199 = arith.constant 0 : index
    %c0_200 = arith.constant 0 : index
    %591 = vector.load %arg2[%c1_197, %c2_198, %c0_199, %c0_200] : memref<2x3x18x18xf32, #tpu.memory_space<vmem>>, vector<1x1x16x16xf32>
    %592 = vector.shape_cast %591 : vector<1x1x16x16xf32> to vector<16x16xf32>
    %593 = vector.broadcast %18 : f32 to vector<16x16xf32>
    %594 = arith.mulf %592, %593 : vector<16x16xf32>
    %595 = arith.addf %584, %594 : vector<16x16xf32>
    %596 = vector.broadcast %45 : f32 to vector<16x16xf32>
    %597 = arith.mulf %592, %596 : vector<16x16xf32>
    %598 = arith.addf %587, %597 : vector<16x16xf32>
    %599 = vector.broadcast %72 : f32 to vector<16x16xf32>
    %600 = arith.mulf %592, %599 : vector<16x16xf32>
    %601 = arith.addf %590, %600 : vector<16x16xf32>
    %c1_201 = arith.constant 1 : index
    %c2_202 = arith.constant 2 : index
    %c0_203 = arith.constant 0 : index
    %c1_204 = arith.constant 1 : index
    %602 = vector.load %arg2[%c1_201, %c2_202, %c0_203, %c1_204] : memref<2x3x18x18xf32, #tpu.memory_space<vmem>>, vector<1x1x16x16xf32>
    %603 = vector.shape_cast %602 : vector<1x1x16x16xf32> to vector<16x16xf32>
    %604 = vector.broadcast %19 : f32 to vector<16x16xf32>
    %605 = arith.mulf %603, %604 : vector<16x16xf32>
    %606 = arith.addf %595, %605 : vector<16x16xf32>
    %607 = vector.broadcast %46 : f32 to vector<16x16xf32>
    %608 = arith.mulf %603, %607 : vector<16x16xf32>
    %609 = arith.addf %598, %608 : vector<16x16xf32>
    %610 = vector.broadcast %73 : f32 to vector<16x16xf32>
    %611 = arith.mulf %603, %610 : vector<16x16xf32>
    %612 = arith.addf %601, %611 : vector<16x16xf32>
    %c1_205 = arith.constant 1 : index
    %c2_206 = arith.constant 2 : index
    %c0_207 = arith.constant 0 : index
    %c2_208 = arith.constant 2 : index
    %613 = vector.load %arg2[%c1_205, %c2_206, %c0_207, %c2_208] : memref<2x3x18x18xf32, #tpu.memory_space<vmem>>, vector<1x1x16x16xf32>
    %614 = vector.shape_cast %613 : vector<1x1x16x16xf32> to vector<16x16xf32>
    %615 = vector.broadcast %20 : f32 to vector<16x16xf32>
    %616 = arith.mulf %614, %615 : vector<16x16xf32>
    %617 = arith.addf %606, %616 : vector<16x16xf32>
    %618 = vector.broadcast %47 : f32 to vector<16x16xf32>
    %619 = arith.mulf %614, %618 : vector<16x16xf32>
    %620 = arith.addf %609, %619 : vector<16x16xf32>
    %621 = vector.broadcast %74 : f32 to vector<16x16xf32>
    %622 = arith.mulf %614, %621 : vector<16x16xf32>
    %623 = arith.addf %612, %622 : vector<16x16xf32>
    %c1_209 = arith.constant 1 : index
    %c2_210 = arith.constant 2 : index
    %c1_211 = arith.constant 1 : index
    %c0_212 = arith.constant 0 : index
    %624 = vector.load %arg2[%c1_209, %c2_210, %c1_211, %c0_212] : memref<2x3x18x18xf32, #tpu.memory_space<vmem>>, vector<1x1x16x16xf32>
    %625 = vector.shape_cast %624 : vector<1x1x16x16xf32> to vector<16x16xf32>
    %626 = vector.broadcast %21 : f32 to vector<16x16xf32>
    %627 = arith.mulf %625, %626 : vector<16x16xf32>
    %628 = arith.addf %617, %627 : vector<16x16xf32>
    %629 = vector.broadcast %48 : f32 to vector<16x16xf32>
    %630 = arith.mulf %625, %629 : vector<16x16xf32>
    %631 = arith.addf %620, %630 : vector<16x16xf32>
    %632 = vector.broadcast %75 : f32 to vector<16x16xf32>
    %633 = arith.mulf %625, %632 : vector<16x16xf32>
    %634 = arith.addf %623, %633 : vector<16x16xf32>
    %c1_213 = arith.constant 1 : index
    %c2_214 = arith.constant 2 : index
    %c1_215 = arith.constant 1 : index
    %c1_216 = arith.constant 1 : index
    %635 = vector.load %arg2[%c1_213, %c2_214, %c1_215, %c1_216] : memref<2x3x18x18xf32, #tpu.memory_space<vmem>>, vector<1x1x16x16xf32>
    %636 = vector.shape_cast %635 : vector<1x1x16x16xf32> to vector<16x16xf32>
    %637 = vector.broadcast %22 : f32 to vector<16x16xf32>
    %638 = arith.mulf %636, %637 : vector<16x16xf32>
    %639 = arith.addf %628, %638 : vector<16x16xf32>
    %640 = vector.broadcast %49 : f32 to vector<16x16xf32>
    %641 = arith.mulf %636, %640 : vector<16x16xf32>
    %642 = arith.addf %631, %641 : vector<16x16xf32>
    %643 = vector.broadcast %76 : f32 to vector<16x16xf32>
    %644 = arith.mulf %636, %643 : vector<16x16xf32>
    %645 = arith.addf %634, %644 : vector<16x16xf32>
    %c1_217 = arith.constant 1 : index
    %c2_218 = arith.constant 2 : index
    %c1_219 = arith.constant 1 : index
    %c2_220 = arith.constant 2 : index
    %646 = vector.load %arg2[%c1_217, %c2_218, %c1_219, %c2_220] : memref<2x3x18x18xf32, #tpu.memory_space<vmem>>, vector<1x1x16x16xf32>
    %647 = vector.shape_cast %646 : vector<1x1x16x16xf32> to vector<16x16xf32>
    %648 = vector.broadcast %23 : f32 to vector<16x16xf32>
    %649 = arith.mulf %647, %648 : vector<16x16xf32>
    %650 = arith.addf %639, %649 : vector<16x16xf32>
    %651 = vector.broadcast %50 : f32 to vector<16x16xf32>
    %652 = arith.mulf %647, %651 : vector<16x16xf32>
    %653 = arith.addf %642, %652 : vector<16x16xf32>
    %654 = vector.broadcast %77 : f32 to vector<16x16xf32>
    %655 = arith.mulf %647, %654 : vector<16x16xf32>
    %656 = arith.addf %645, %655 : vector<16x16xf32>
    %c1_221 = arith.constant 1 : index
    %c2_222 = arith.constant 2 : index
    %c2_223 = arith.constant 2 : index
    %c0_224 = arith.constant 0 : index
    %657 = vector.load %arg2[%c1_221, %c2_222, %c2_223, %c0_224] : memref<2x3x18x18xf32, #tpu.memory_space<vmem>>, vector<1x1x16x16xf32>
    %658 = vector.shape_cast %657 : vector<1x1x16x16xf32> to vector<16x16xf32>
    %659 = vector.broadcast %24 : f32 to vector<16x16xf32>
    %660 = arith.mulf %658, %659 : vector<16x16xf32>
    %661 = arith.addf %650, %660 : vector<16x16xf32>
    %662 = vector.broadcast %51 : f32 to vector<16x16xf32>
    %663 = arith.mulf %658, %662 : vector<16x16xf32>
    %664 = arith.addf %653, %663 : vector<16x16xf32>
    %665 = vector.broadcast %78 : f32 to vector<16x16xf32>
    %666 = arith.mulf %658, %665 : vector<16x16xf32>
    %667 = arith.addf %656, %666 : vector<16x16xf32>
    %c1_225 = arith.constant 1 : index
    %c2_226 = arith.constant 2 : index
    %c2_227 = arith.constant 2 : index
    %c1_228 = arith.constant 1 : index
    %668 = vector.load %arg2[%c1_225, %c2_226, %c2_227, %c1_228] : memref<2x3x18x18xf32, #tpu.memory_space<vmem>>, vector<1x1x16x16xf32>
    %669 = vector.shape_cast %668 : vector<1x1x16x16xf32> to vector<16x16xf32>
    %670 = vector.broadcast %25 : f32 to vector<16x16xf32>
    %671 = arith.mulf %669, %670 : vector<16x16xf32>
    %672 = arith.addf %661, %671 : vector<16x16xf32>
    %673 = vector.broadcast %52 : f32 to vector<16x16xf32>
    %674 = arith.mulf %669, %673 : vector<16x16xf32>
    %675 = arith.addf %664, %674 : vector<16x16xf32>
    %676 = vector.broadcast %79 : f32 to vector<16x16xf32>
    %677 = arith.mulf %669, %676 : vector<16x16xf32>
    %678 = arith.addf %667, %677 : vector<16x16xf32>
    %c1_229 = arith.constant 1 : index
    %c2_230 = arith.constant 2 : index
    %c2_231 = arith.constant 2 : index
    %c2_232 = arith.constant 2 : index
    %679 = vector.load %arg2[%c1_229, %c2_230, %c2_231, %c2_232] : memref<2x3x18x18xf32, #tpu.memory_space<vmem>>, vector<1x1x16x16xf32>
    %680 = vector.shape_cast %679 : vector<1x1x16x16xf32> to vector<16x16xf32>
    %681 = vector.broadcast %26 : f32 to vector<16x16xf32>
    %682 = arith.mulf %680, %681 : vector<16x16xf32>
    %683 = arith.addf %672, %682 : vector<16x16xf32>
    %684 = vector.broadcast %53 : f32 to vector<16x16xf32>
    %685 = arith.mulf %680, %684 : vector<16x16xf32>
    %686 = arith.addf %675, %685 : vector<16x16xf32>
    %687 = vector.broadcast %80 : f32 to vector<16x16xf32>
    %688 = arith.mulf %680, %687 : vector<16x16xf32>
    %689 = arith.addf %678, %688 : vector<16x16xf32>
    %c1_233 = arith.constant 1 : index
    %c0_234 = arith.constant 0 : index
    %c0_235 = arith.constant 0 : index
    %c0_236 = arith.constant 0 : index
    %690 = vector.load %arg3[%c1_233, %c0_234, %c0_235, %c0_236] : memref<2x3x16x16xf32, #tpu.memory_space<vmem>>, vector<1x1x16x16xf32>
    %691 = vector.shape_cast %690 : vector<1x1x16x16xf32> to vector<16x16xf32>
    %692 = vector.shape_cast %683 : vector<16x16xf32> to vector<1x1x16x16xf32>
    tpu.vector_store %arg3[%c1_233, %c0_234, %c0_235, %c0_236], %692 {strides = array<i32>} : memref<2x3x16x16xf32, #tpu.memory_space<vmem>>, vector<1x1x16x16xf32>,
    %c1_237 = arith.constant 1 : index
    %c1_238 = arith.constant 1 : index
    %c0_239 = arith.constant 0 : index
    %c0_240 = arith.constant 0 : index
    %693 = vector.load %arg3[%c1_237, %c1_238, %c0_239, %c0_240] : memref<2x3x16x16xf32, #tpu.memory_space<vmem>>, vector<1x1x16x16xf32>
    %694 = vector.shape_cast %693 : vector<1x1x16x16xf32> to vector<16x16xf32>
    %695 = vector.shape_cast %686 : vector<16x16xf32> to vector<1x1x16x16xf32>
    tpu.vector_store %arg3[%c1_237, %c1_238, %c0_239, %c0_240], %695 {strides = array<i32>} : memref<2x3x16x16xf32, #tpu.memory_space<vmem>>, vector<1x1x16x16xf32>,
    %c1_241 = arith.constant 1 : index
    %c2_242 = arith.constant 2 : index
    %c0_243 = arith.constant 0 : index
    %c0_244 = arith.constant 0 : index
    %696 = vector.load %arg3[%c1_241, %c2_242, %c0_243, %c0_244] : memref<2x3x16x16xf32, #tpu.memory_space<vmem>>, vector<1x1x16x16xf32>
    %697 = vector.shape_cast %696 : vector<1x1x16x16xf32> to vector<16x16xf32>
    %698 = vector.shape_cast %689 : vector<16x16xf32> to vector<1x1x16x16xf32>
    tpu.vector_store %arg3[%c1_241, %c2_242, %c0_243, %c0_244], %698 {strides = array<i32>} : memref<2x3x16x16xf32, #tpu.memory_space<vmem>>, vector<1x1x16x16xf32>,
    return
  }
  func.func @transform_0(%arg0: i32, %arg1: memref<81xf32, #tpu.memory_space<smem>>) -> (i32, i32, i32, i32) {
    %c0_i32 = arith.constant 0 : i32
    %c0_i32_0 = arith.constant 0 : i32
    %c0_i32_1 = arith.constant 0 : i32
    %c0_i32_2 = arith.constant 0 : i32
    return %arg0, %c0_i32, %c0_i32_0, %c0_i32_1 : i32, i32, i32, i32
  }
  func.func @transform_1(%arg0: i32, %arg1: memref<81xf32, #tpu.memory_space<smem>>) -> (i32, i32, i32, i32) {
    %c0_i32 = arith.constant 0 : i32
    %c0_i32_0 = arith.constant 0 : i32
    %c0_i32_1 = arith.constant 0 : i32
    %c0_i32_2 = arith.constant 0 : i32
    return %arg0, %c0_i32, %c0_i32_0, %c0_i32_1 : i32, i32, i32, i32
  }
}

</mosaic_0001>

<llo_original>
// kernel: bconv_module_forward.1
$region0: #{bconv_module_forward.1}
  #allocation0 [shape = 'u32[]', space=smem, size = 0x4, offset = 0x4, fixed_abs, tag = 'smem constant byte address 0x4 - core index']
  #allocation1 [shape = 'u32[72,128]{1,0:T(1,128)}', space=vmem, size = 0x9000, scoped, tag = 'internal scratch']
  #allocation2 [shape = 's32[1]{0}', space=sflag, size = 0x4, scoped, tag = 'scoped memory for bconv_module_forward.1']
  #allocation3 [shape = 'u8[512]{0}', space=smem, size = 0x200, scoped, tag = 'prefetched SMEM operand 0']
  %s0 = inlined_call_operand.vmem [shape: f32[81], index: 0, kind: input, shape index: {}]
  %s1 = inlined_call_operand.vmem [shape: f32[2,3,18,18], index: 1, kind: input, shape index: {}]
  %s2 = inlined_call_operand.hbm [shape: f32[2,3,16,16], index: 2, kind: output, shape index: {}]
  %s3 = sld [smem:[#allocation0]]
  $region14: #{bconv_module_forward.1} parent=0
    _
  %s5 = ssub.s32 1, %s3
  %s6 = scalar_select 0, %s5, %s3
  %s8 = sshll.u32 %s0, 4
  %s9 = int_to_ptr.vmem [resolvable:$true] %s8
  %11 = dma.vmem_to_smem %s9, 16, [#allocation3], [#allocation2]
  %13 = dma.done [#allocation2], 16
  %14 = sfence
  $region1: #{bconv_module_forward.1} parent=0
    #allocation4 [shape = 'u8[49152]{0}', space=vmem, size = 0xc000, scoped, tag = 'output window, operand 0, single buffered']
    #allocation5 [shape = 's32[1]{0}', space=sflag, size = 0x4, scoped, tag = 'scoped memory for bconv_module_forward.1']
    %15 = vsyncpa [#allocation5], 0
    // Predicated region
    $region2: #{bconv_module_forward.1} parent=1 // pred_check
      _
    $region3: #{bconv_module_forward.1} parent=1 // pred_check_branch
      %17 = sbr.rel (0) target = $region5
    $region4: #{bconv_module_forward.1} parent=1 // pred_region
      _
    $region5: #{bconv_module_forward.1} parent=1 // pred_fallthru
      _
    %s18 = sld [smem:[#allocation3]]
    %s19 = sld [smem:[#allocation3 + $0x1]]
    %s20 = sld [smem:[#allocation3 + $0x2]]
    %s21 = sld [smem:[#allocation3 + $0x3]]
    %s22 = sld [smem:[#allocation3 + $0x4]]
    %s23 = sld [smem:[#allocation3 + $0x5]]
    %s24 = sld [smem:[#allocation3 + $0x6]]
    %s25 = sld [smem:[#allocation3 + $0x7]]
    %s26 = sld [smem:[#allocation3 + $0x8]]
    %s27 = sld [smem:[#allocation3 + $0x9]]
    %s28 = sld [smem:[#allocation3 + $0xa]]
    %s29 = sld [smem:[#allocation3 + $0xb]]
    %s30 = sld [smem:[#allocation3 + $0xc]]
    %s31 = sld [smem:[#allocation3 + $0xd]]
    %s32 = sld [smem:[#allocation3 + $0xe]]
    %s33 = sld [smem:[#allocation3 + $0xf]]
    %s34 = sld [smem:[#allocation3 + $0x10]]
    %s35 = sld [smem:[#allocation3 + $0x11]]
    %s36 = sld [smem:[#allocation3 + $0x12]]
    %s37 = sld [smem:[#allocation3 + $0x13]]
    %s38 = sld [smem:[#allocation3 + $0x14]]
    %s39 = sld [smem:[#allocation3 + $0x15]]
    %s40 = sld [smem:[#allocation3 + $0x16]]
    %s41 = sld [smem:[#allocation3 + $0x17]]
    %s42 = sld [smem:[#allocation3 + $0x18]]
    %s43 = sld [smem:[#allocation3 + $0x19]]
    %s44 = sld [smem:[#allocation3 + $0x1a]]
    %s45 = sld [smem:[#allocation3 + $0x1b]]
    %s46 = sld [smem:[#allocation3 + $0x1c]]
    %s47 = sld [smem:[#allocation3 + $0x1d]]
    %s48 = sld [smem:[#allocation3 + $0x1e]]
    %s49 = sld [smem:[#allocation3 + $0x1f]]
    %s50 = sld [smem:[#allocation3 + $0x20]]
    %s51 = sld [smem:[#allocation3 + $0x21]]
    %s52 = sld [smem:[#allocation3 + $0x22]]
    %s53 = sld [smem:[#allocation3 + $0x23]]
    %s54 = sld [smem:[#allocation3 + $0x24]]
    %s55 = sld [smem:[#allocation3 + $0x25]]
    %s56 = sld [smem:[#allocation3 + $0x26]]
    %s57 = sld [smem:[#allocation3 + $0x27]]
    %s58 = sld [smem:[#allocation3 + $0x28]]
    %s59 = sld [smem:[#allocation3 + $0x29]]
    %s60 = sld [smem:[#allocation3 + $0x2a]]
    %s61 = sld [smem:[#allocation3 + $0x2b]]
    %s62 = sld [smem:[#allocation3 + $0x2c]]
    %s63 = sld [smem:[#allocation3 + $0x2d]]
    %s64 = sld [smem:[#allocation3 + $0x2e]]
    %s65 = sld [smem:[#allocation3 + $0x2f]]
    %s66 = sld [smem:[#allocation3 + $0x30]]
    %s67 = sld [smem:[#allocation3 + $0x31]]
    %s68 = sld [smem:[#allocation3 + $0x32]]
    %s69 = sld [smem:[#allocation3 + $0x33]]
    %s70 = sld [smem:[#allocation3 + $0x34]]
    %s71 = sld [smem:[#allocation3 + $0x35]]
    %s72 = sld [smem:[#allocation3 + $0x36]]
    %s73 = sld [smem:[#allocation3 + $0x37]]
    %s74 = sld [smem:[#allocation3 + $0x38]]
    %s75 = sld [smem:[#allocation3 + $0x39]]
    %s76 = sld [smem:[#allocation3 + $0x3a]]
    %s77 = sld [smem:[#allocation3 + $0x3b]]
    %s78 = sld [smem:[#allocation3 + $0x3c]]
    %s79 = sld [smem:[#allocation3 + $0x3d]]
    %s80 = sld [smem:[#allocation3 + $0x3e]]
    %s81 = sld [smem:[#allocation3 + $0x3f]]
    %s82 = sld [smem:[#allocation3 + $0x40]]
    %s83 = sld [smem:[#allocation3 + $0x41]]
    %s84 = sld [smem:[#allocation3 + $0x42]]
    %s85 = sld [smem:[#allocation3 + $0x43]]
    %s86 = sld [smem:[#allocation3 + $0x44]]
    %s87 = sld [smem:[#allocation3 + $0x45]]
    %s88 = sld [smem:[#allocation3 + $0x46]]
    %s89 = sld [smem:[#allocation3 + $0x47]]
    %s90 = sld [smem:[#allocation3 + $0x48]]
    %s91 = sld [smem:[#allocation3 + $0x49]]
    %s92 = sld [smem:[#allocation3 + $0x4a]]
    %s93 = sld [smem:[#allocation3 + $0x4b]]
    %s94 = sld [smem:[#allocation3 + $0x4c]]
    %s95 = sld [smem:[#allocation3 + $0x4d]]
    %s96 = sld [smem:[#allocation3 + $0x4e]]
    %s97 = sld [smem:[#allocation3 + $0x4f]]
    %s98 = sld [smem:[#allocation3 + $0x50]]
    %v99 = vld [vmem:[%s1] sm:$0xff]
    %v100 = vld [vmem:[%s1 + $0x8] sm:$0xff]
    %v101 = vstv %s18
    %v102 = vmul.f32 %v99, %v101
    %v103 = vmul.f32 %v100, %v101
    %v104 = vadd.f32 %v102, 0.0
    %v105 = vadd.f32 %v103, 0.0
    %v106 = vstv %s45
    %v107 = vmul.f32 %v99, %v106
    %v108 = vmul.f32 %v100, %v106
    %v109 = vadd.f32 %v107, 0.0
    %v110 = vadd.f32 %v108, 0.0
    %v111 = vstv %s72
    %v112 = vmul.f32 %v99, %v111
    %v113 = vmul.f32 %v100, %v111
    %v114 = vadd.f32 %v112, 0.0
    %v115 = vadd.f32 %v113, 0.0
    %v116 = vstv %s19
    %v117 = vmul.f32 %v99, %v116
    %v118 = vmul.f32 %v100, %v116
    %121 = vrot.lane.b32.xlu0 %v117, 127
    %v122 = vpop.permute.xlu0 %121
    %123 = vrot.lane.b32.xlu0 %v118, 127
    %v124 = vpop.permute.xlu0 %123
    %v127 = vadd.f32 %v104, %v122
    %v128 = vadd.f32 %v105, %v124
    %v129 = vstv %s46
    %v130 = vmul.f32 %v99, %v129
    %v131 = vmul.f32 %v100, %v129
    %134 = vrot.lane.b32.xlu0 %v130, 127
    %v135 = vpop.permute.xlu0 %134
    %136 = vrot.lane.b32.xlu0 %v131, 127
    %v137 = vpop.permute.xlu0 %136
    %v140 = vadd.f32 %v109, %v135
    %v141 = vadd.f32 %v110, %v137
    %v142 = vstv %s73
    %v143 = vmul.f32 %v99, %v142
    %v144 = vmul.f32 %v100, %v142
    %147 = vrot.lane.b32.xlu0 %v143, 127
    %v148 = vpop.permute.xlu0 %147
    %149 = vrot.lane.b32.xlu0 %v144, 127
    %v150 = vpop.permute.xlu0 %149
    %v153 = vadd.f32 %v114, %v148
    %v154 = vadd.f32 %v115, %v150
    %v155 = vstv %s20
    %v156 = vmul.f32 %v99, %v155
    %v157 = vmul.f32 %v100, %v155
    %160 = vrot.lane.b32.xlu0 %v156, 126
    %v161 = vpop.permute.xlu0 %160
    %162 = vrot.lane.b32.xlu0 %v157, 126
    %v163 = vpop.permute.xlu0 %162
    %v166 = vadd.f32 %v127, %v161
    %v167 = vadd.f32 %v128, %v163
    %v168 = vstv %s47
    %v169 = vmul.f32 %v99, %v168
    %v170 = vmul.f32 %v100, %v168
    %173 = vrot.lane.b32.xlu0 %v169, 126
    %v174 = vpop.permute.xlu0 %173
    %175 = vrot.lane.b32.xlu0 %v170, 126
    %v176 = vpop.permute.xlu0 %175
    %v179 = vadd.f32 %v140, %v174
    %v180 = vadd.f32 %v141, %v176
    %v181 = vstv %s74
    %v182 = vmul.f32 %v99, %v181
    %v183 = vmul.f32 %v100, %v181
    %186 = vrot.lane.b32.xlu0 %v182, 126
    %v187 = vpop.permute.xlu0 %186
    %188 = vrot.lane.b32.xlu0 %v183, 126
    %v189 = vpop.permute.xlu0 %188
    %v192 = vadd.f32 %v153, %v187
    %v193 = vadd.f32 %v154, %v189
    %v194 = vld [vmem:[%s1 + $0x1] sm:$0xff]
    %v195 = vld [vmem:[%s1 + $0x9] sm:$0xff]
    %v196 = vstv %s21
    %v197 = vmul.f32 %v194, %v196
    %v198 = vmul.f32 %v195, %v196
    %v199 = vadd.f32 %v166, %v197
    %v200 = vadd.f32 %v167, %v198
    %v201 = vstv %s48
    %v202 = vmul.f32 %v194, %v201
    %v203 = vmul.f32 %v195, %v201
    %v204 = vadd.f32 %v179, %v202
    %v205 = vadd.f32 %v180, %v203
    %v206 = vstv %s75
    %v207 = vmul.f32 %v194, %v206
    %v208 = vmul.f32 %v195, %v206
    %v209 = vadd.f32 %v192, %v207
    %v210 = vadd.f32 %v193, %v208
    %v211 = vstv %s22
    %v212 = vmul.f32 %v194, %v211
    %v213 = vmul.f32 %v195, %v211
    %216 = vrot.lane.b32.xlu0 %v212, 127
    %v217 = vpop.permute.xlu0 %216
    %218 = vrot.lane.b32.xlu0 %v213, 127
    %v219 = vpop.permute.xlu0 %218
    %v222 = vadd.f32 %v199, %v217
    %v223 = vadd.f32 %v200, %v219
    %v224 = vstv %s49
    %v225 = vmul.f32 %v194, %v224
    %v226 = vmul.f32 %v195, %v224
    %229 = vrot.lane.b32.xlu0 %v225, 127
    %v230 = vpop.permute.xlu0 %229
    %231 = vrot.lane.b32.xlu0 %v226, 127
    %v232 = vpop.permute.xlu0 %231
    %v235 = vadd.f32 %v204, %v230
    %v236 = vadd.f32 %v205, %v232
    %v237 = vstv %s76
    %v238 = vmul.f32 %v194, %v237
    %v239 = vmul.f32 %v195, %v237
    %242 = vrot.lane.b32.xlu0 %v238, 127
    %v243 = vpop.permute.xlu0 %242
    %244 = vrot.lane.b32.xlu0 %v239, 127
    %v245 = vpop.permute.xlu0 %244
    %v248 = vadd.f32 %v209, %v243
    %v249 = vadd.f32 %v210, %v245
    %v250 = vstv %s23
    %v251 = vmul.f32 %v194, %v250
    %v252 = vmul.f32 %v195, %v250
    %255 = vrot.lane.b32.xlu0 %v251, 126
    %v256 = vpop.permute.xlu0 %255
    %257 = vrot.lane.b32.xlu0 %v252, 126
    %v258 = vpop.permute.xlu0 %257
    %v261 = vadd.f32 %v222, %v256
    %v262 = vadd.f32 %v223, %v258
    %v263 = vstv %s50
    %v264 = vmul.f32 %v194, %v263
    %v265 = vmul.f32 %v195, %v263
    %268 = vrot.lane.b32.xlu0 %v264, 126
    %v269 = vpop.permute.xlu0 %268
    %270 = vrot.lane.b32.xlu0 %v265, 126
    %v271 = vpop.permute.xlu0 %270
    %v274 = vadd.f32 %v235, %v269
    %v275 = vadd.f32 %v236, %v271
    %v276 = vstv %s77
    %v277 = vmul.f32 %v194, %v276
    %v278 = vmul.f32 %v195, %v276
    %281 = vrot.lane.b32.xlu0 %v277, 126
    %v282 = vpop.permute.xlu0 %281
    %283 = vrot.lane.b32.xlu0 %v278, 126
    %v284 = vpop.permute.xlu0 %283
    %v287 = vadd.f32 %v248, %v282
    %v288 = vadd.f32 %v249, %v284
    %v289 = vld [vmem:[%s1 + $0x2] sm:$0xff]
    %v290 = vld [vmem:[%s1 + $0xa] sm:$0xff]
    %v291 = vstv %s24
    %v292 = vmul.f32 %v289, %v291
    %v293 = vmul.f32 %v290, %v291
    %v294 = vadd.f32 %v261, %v292
    %v295 = vadd.f32 %v262, %v293
    %v296 = vstv %s51
    %v297 = vmul.f32 %v289, %v296
    %v298 = vmul.f32 %v290, %v296
    %v299 = vadd.f32 %v274, %v297
    %v300 = vadd.f32 %v275, %v298
    %v301 = vstv %s78
    %v302 = vmul.f32 %v289, %v301
    %v303 = vmul.f32 %v290, %v301
    %v304 = vadd.f32 %v287, %v302
    %v305 = vadd.f32 %v288, %v303
    %v306 = vstv %s25
    %v307 = vmul.f32 %v289, %v306
    %v308 = vmul.f32 %v290, %v306
    %311 = vrot.lane.b32.xlu0 %v307, 127
    %v312 = vpop.permute.xlu0 %311
    %313 = vrot.lane.b32.xlu0 %v308, 127
    %v314 = vpop.permute.xlu0 %313
    %v317 = vadd.f32 %v294, %v312
    %v318 = vadd.f32 %v295, %v314
    %v319 = vstv %s52
    %v320 = vmul.f32 %v289, %v319
    %v321 = vmul.f32 %v290, %v319
    %324 = vrot.lane.b32.xlu0 %v320, 127
    %v325 = vpop.permute.xlu0 %324
    %326 = vrot.lane.b32.xlu0 %v321, 127
    %v327 = vpop.permute.xlu0 %326
    %v330 = vadd.f32 %v299, %v325
    %v331 = vadd.f32 %v300, %v327
    %v332 = vstv %s79
    %v333 = vmul.f32 %v289, %v332
    %v334 = vmul.f32 %v290, %v332
    %337 = vrot.lane.b32.xlu0 %v333, 127
    %v338 = vpop.permute.xlu0 %337
    %339 = vrot.lane.b32.xlu0 %v334, 127
    %v340 = vpop.permute.xlu0 %339
    %v343 = vadd.f32 %v304, %v338
    %v344 = vadd.f32 %v305, %v340
    %v345 = vstv %s26
    %v346 = vmul.f32 %v289, %v345
    %v347 = vmul.f32 %v290, %v345
    %350 = vrot.lane.b32.xlu0 %v346, 126
    %v351 = vpop.permute.xlu0 %350
    %352 = vrot.lane.b32.xlu0 %v347, 126
    %v353 = vpop.permute.xlu0 %352
    %v356 = vadd.f32 %v317, %v351
    %v357 = vadd.f32 %v318, %v353
    %v358 = vstv %s53
    %v359 = vmul.f32 %v289, %v358
    %v360 = vmul.f32 %v290, %v358
    %363 = vrot.lane.b32.xlu0 %v359, 126
    %v364 = vpop.permute.xlu0 %363
    %365 = vrot.lane.b32.xlu0 %v360, 126
    %v366 = vpop.permute.xlu0 %365
    %v369 = vadd.f32 %v330, %v364
    %v370 = vadd.f32 %v331, %v366
    %v371 = vstv %s80
    %v372 = vmul.f32 %v289, %v371
    %v373 = vmul.f32 %v290, %v371
    %376 = vrot.lane.b32.xlu0 %v372, 126
    %v377 = vpop.permute.xlu0 %376
    %378 = vrot.lane.b32.xlu0 %v373, 126
    %v379 = vpop.permute.xlu0 %378
    %v382 = vadd.f32 %v343, %v377
    %v383 = vadd.f32 %v344, %v379
    %s384 = scalar_lea.vmem %s1, 24
    %v385 = vld [vmem:[%s384] sm:$0xff]
    %v386 = vld [vmem:[%s384 + $0x8] sm:$0xff]
    %v387 = vstv %s27
    %v388 = vmul.f32 %v385, %v387
    %v389 = vmul.f32 %v386, %v387
    %v390 = vadd.f32 %v356, %v388
    %v391 = vadd.f32 %v357, %v389
    %v392 = vstv %s54
    %v393 = vmul.f32 %v385, %v392
    %v394 = vmul.f32 %v386, %v392
    %v395 = vadd.f32 %v369, %v393
    %v396 = vadd.f32 %v370, %v394
    %v397 = vstv %s81
    %v398 = vmul.f32 %v385, %v397
    %v399 = vmul.f32 %v386, %v397
    %v400 = vadd.f32 %v382, %v398
    %v401 = vadd.f32 %v383, %v399
    %v402 = vstv %s28
    %v403 = vmul.f32 %v385, %v402
    %v404 = vmul.f32 %v386, %v402
    %407 = vrot.lane.b32.xlu0 %v403, 127
    %v408 = vpop.permute.xlu0 %407
    %409 = vrot.lane.b32.xlu0 %v404, 127
    %v410 = vpop.permute.xlu0 %409
    %v413 = vadd.f32 %v390, %v408
    %v414 = vadd.f32 %v391, %v410
    %v415 = vstv %s55
    %v416 = vmul.f32 %v385, %v415
    %v417 = vmul.f32 %v386, %v415
    %420 = vrot.lane.b32.xlu0 %v416, 127
    %v421 = vpop.permute.xlu0 %420
    %422 = vrot.lane.b32.xlu0 %v417, 127
    %v423 = vpop.permute.xlu0 %422
    %v426 = vadd.f32 %v395, %v421
    %v427 = vadd.f32 %v396, %v423
    %v428 = vstv %s82
    %v429 = vmul.f32 %v385, %v428
    %v430 = vmul.f32 %v386, %v428
    %433 = vrot.lane.b32.xlu0 %v429, 127
    %v434 = vpop.permute.xlu0 %433
    %435 = vrot.lane.b32.xlu0 %v430, 127
    %v436 = vpop.permute.xlu0 %435
    %v439 = vadd.f32 %v400, %v434
    %v440 = vadd.f32 %v401, %v436
    %v441 = vstv %s29
    %v442 = vmul.f32 %v385, %v441
    %v443 = vmul.f32 %v386, %v441
    %446 = vrot.lane.b32.xlu0 %v442, 126
    %v447 = vpop.permute.xlu0 %446
    %448 = vrot.lane.b32.xlu0 %v443, 126
    %v449 = vpop.permute.xlu0 %448
    %v452 = vadd.f32 %v413, %v447
    %v453 = vadd.f32 %v414, %v449
    %v454 = vstv %s56
    %v455 = vmul.f32 %v385, %v454
    %v456 = vmul.f32 %v386, %v454
    %459 = vrot.lane.b32.xlu0 %v455, 126
    %v460 = vpop.permute.xlu0 %459
    %461 = vrot.lane.b32.xlu0 %v456, 126
    %v462 = vpop.permute.xlu0 %461
    %v465 = vadd.f32 %v426, %v460
    %v466 = vadd.f32 %v427, %v462
    %v467 = vstv %s83
    %v468 = vmul.f32 %v385, %v467
    %v469 = vmul.f32 %v386, %v467
    %472 = vrot.lane.b32.xlu0 %v468, 126
    %v473 = vpop.permute.xlu0 %472
    %474 = vrot.lane.b32.xlu0 %v469, 126
    %v475 = vpop.permute.xlu0 %474
    %v478 = vadd.f32 %v439, %v473
    %v479 = vadd.f32 %v440, %v475
    %v480 = vld [vmem:[%s384 + $0x1] sm:$0xff]
    %v481 = vld [vmem:[%s384 + $0x9] sm:$0xff]
    %v482 = vstv %s30
    %v483 = vmul.f32 %v480, %v482
    %v484 = vmul.f32 %v481, %v482
    %v485 = vadd.f32 %v452, %v483
    %v486 = vadd.f32 %v453, %v484
    %v487 = vstv %s57
    %v488 = vmul.f32 %v480, %v487
    %v489 = vmul.f32 %v481, %v487
    %v490 = vadd.f32 %v465, %v488
    %v491 = vadd.f32 %v466, %v489
    %v492 = vstv %s84
    %v493 = vmul.f32 %v480, %v492
    %v494 = vmul.f32 %v481, %v492
    %v495 = vadd.f32 %v478, %v493
    %v496 = vadd.f32 %v479, %v494
    %v497 = vstv %s31
    %v498 = vmul.f32 %v480, %v497
    %v499 = vmul.f32 %v481, %v497
    %502 = vrot.lane.b32.xlu0 %v498, 127
    %v503 = vpop.permute.xlu0 %502
    %504 = vrot.lane.b32.xlu0 %v499, 127
    %v505 = vpop.permute.xlu0 %504
    %v508 = vadd.f32 %v485, %v503
    %v509 = vadd.f32 %v486, %v505
    %v510 = vstv %s58
    %v511 = vmul.f32 %v480, %v510
    %v512 = vmul.f32 %v481, %v510
    %515 = vrot.lane.b32.xlu0 %v511, 127
    %v516 = vpop.permute.xlu0 %515
    %517 = vrot.lane.b32.xlu0 %v512, 127
    %v518 = vpop.permute.xlu0 %517
    %v521 = vadd.f32 %v490, %v516
    %v522 = vadd.f32 %v491, %v518
    %v523 = vstv %s85
    %v524 = vmul.f32 %v480, %v523
    %v525 = vmul.f32 %v481, %v523
    %528 = vrot.lane.b32.xlu0 %v524, 127
    %v529 = vpop.permute.xlu0 %528
    %530 = vrot.lane.b32.xlu0 %v525, 127
    %v531 = vpop.permute.xlu0 %530
    %v534 = vadd.f32 %v495, %v529
    %v535 = vadd.f32 %v496, %v531
    %v536 = vstv %s32
    %v537 = vmul.f32 %v480, %v536
    %v538 = vmul.f32 %v481, %v536
    %541 = vrot.lane.b32.xlu0 %v537, 126
    %v542 = vpop.permute.xlu0 %541
    %543 = vrot.lane.b32.xlu0 %v538, 126
    %v544 = vpop.permute.xlu0 %543
    %v547 = vadd.f32 %v508, %v542
    %v548 = vadd.f32 %v509, %v544
    %v549 = vstv %s59
    %v550 = vmul.f32 %v480, %v549
    %v551 = vmul.f32 %v481, %v549
    %554 = vrot.lane.b32.xlu0 %v550, 126
    %v555 = vpop.permute.xlu0 %554
    %556 = vrot.lane.b32.xlu0 %v551, 126
    %v557 = vpop.permute.xlu0 %556
    %v560 = vadd.f32 %v521, %v555
    %v561 = vadd.f32 %v522, %v557
    %v562 = vstv %s86
    %v563 = vmul.f32 %v480, %v562
    %v564 = vmul.f32 %v481, %v562
    %567 = vrot.lane.b32.xlu0 %v563, 126
    %v568 = vpop.permute.xlu0 %567
    %569 = vrot.lane.b32.xlu0 %v564, 126
    %v570 = vpop.permute.xlu0 %569
    %v573 = vadd.f32 %v534, %v568
    %v574 = vadd.f32 %v535, %v570
    %v575 = vld [vmem:[%s384 + $0x2] sm:$0xff]
    %v576 = vld [vmem:[%s384 + $0xa] sm:$0xff]
    %v577 = vstv %s33
    %v578 = vmul.f32 %v575, %v577
    %v579 = vmul.f32 %v576, %v577
    %v580 = vadd.f32 %v547, %v578
    %v581 = vadd.f32 %v548, %v579
    %v582 = vstv %s60
    %v583 = vmul.f32 %v575, %v582
    %v584 = vmul.f32 %v576, %v582
    %v585 = vadd.f32 %v560, %v583
    %v586 = vadd.f32 %v561, %v584
    %v587 = vstv %s87
    %v588 = vmul.f32 %v575, %v587
    %v589 = vmul.f32 %v576, %v587
    %v590 = vadd.f32 %v573, %v588
    %v591 = vadd.f32 %v574, %v589
    %v592 = vstv %s34
    %v593 = vmul.f32 %v575, %v592
    %v594 = vmul.f32 %v576, %v592
    %597 = vrot.lane.b32.xlu0 %v593, 127
    %v598 = vpop.permute.xlu0 %597
    %599 = vrot.lane.b32.xlu0 %v594, 127
    %v600 = vpop.permute.xlu0 %599
    %v603 = vadd.f32 %v580, %v598
    %v604 = vadd.f32 %v581, %v600
    %v605 = vstv %s61
    %v606 = vmul.f32 %v575, %v605
    %v607 = vmul.f32 %v576, %v605
    %610 = vrot.lane.b32.xlu0 %v606, 127
    %v611 = vpop.permute.xlu0 %610
    %612 = vrot.lane.b32.xlu0 %v607, 127
    %v613 = vpop.permute.xlu0 %612
    %v616 = vadd.f32 %v585, %v611
    %v617 = vadd.f32 %v586, %v613
    %v618 = vstv %s88
    %v619 = vmul.f32 %v575, %v618
    %v620 = vmul.f32 %v576, %v618
    %623 = vrot.lane.b32.xlu0 %v619, 127
    %v624 = vpop.permute.xlu0 %623
    %625 = vrot.lane.b32.xlu0 %v620, 127
    %v626 = vpop.permute.xlu0 %625
    %v629 = vadd.f32 %v590, %v624
    %v630 = vadd.f32 %v591, %v626
    %v631 = vstv %s35
    %v632 = vmul.f32 %v575, %v631
    %v633 = vmul.f32 %v576, %v631
    %636 = vrot.lane.b32.xlu0 %v632, 126
    %v637 = vpop.permute.xlu0 %636
    %638 = vrot.lane.b32.xlu0 %v633, 126
    %v639 = vpop.permute.xlu0 %638
    %v642 = vadd.f32 %v603, %v637
    %v643 = vadd.f32 %v604, %v639
    %v644 = vstv %s62
    %v645 = vmul.f32 %v575, %v644
    %v646 = vmul.f32 %v576, %v644
    %649 = vrot.lane.b32.xlu0 %v645, 126
    %v650 = vpop.permute.xlu0 %649
    %651 = vrot.lane.b32.xlu0 %v646, 126
    %v652 = vpop.permute.xlu0 %651
    %v655 = vadd.f32 %v616, %v650
    %v656 = vadd.f32 %v617, %v652
    %v657 = vstv %s89
    %v658 = vmul.f32 %v575, %v657
    %v659 = vmul.f32 %v576, %v657
    %662 = vrot.lane.b32.xlu0 %v658, 126
    %v663 = vpop.permute.xlu0 %662
    %664 = vrot.lane.b32.xlu0 %v659, 126
    %v665 = vpop.permute.xlu0 %664
    %v668 = vadd.f32 %v629, %v663
    %v669 = vadd.f32 %v630, %v665
    %s670 = scalar_lea.vmem %s1, 48
    %v671 = vld [vmem:[%s670] sm:$0xff]
    %v672 = vld [vmem:[%s670 + $0x8] sm:$0xff]
    %v673 = vstv %s36
    %v674 = vmul.f32 %v671, %v673
    %v675 = vmul.f32 %v672, %v673
    %v676 = vadd.f32 %v642, %v674
    %v677 = vadd.f32 %v643, %v675
    %v678 = vstv %s63
    %v679 = vmul.f32 %v671, %v678
    %v680 = vmul.f32 %v672, %v678
    %v681 = vadd.f32 %v655, %v679
    %v682 = vadd.f32 %v656, %v680
    %v683 = vstv %s90
    %v684 = vmul.f32 %v671, %v683
    %v685 = vmul.f32 %v672, %v683
    %v686 = vadd.f32 %v668, %v684
    %v687 = vadd.f32 %v669, %v685
    %v688 = vstv %s37
    %v689 = vmul.f32 %v671, %v688
    %v690 = vmul.f32 %v672, %v688
    %693 = vrot.lane.b32.xlu0 %v689, 127
    %v694 = vpop.permute.xlu0 %693
    %695 = vrot.lane.b32.xlu0 %v690, 127
    %v696 = vpop.permute.xlu0 %695
    %v699 = vadd.f32 %v676, %v694
    %v700 = vadd.f32 %v677, %v696
    %v701 = vstv %s64
    %v702 = vmul.f32 %v671, %v701
    %v703 = vmul.f32 %v672, %v701
    %706 = vrot.lane.b32.xlu0 %v702, 127
    %v707 = vpop.permute.xlu0 %706
    %708 = vrot.lane.b32.xlu0 %v703, 127
    %v709 = vpop.permute.xlu0 %708
    %v712 = vadd.f32 %v681, %v707
    %v713 = vadd.f32 %v682, %v709
    %v714 = vstv %s91
    %v715 = vmul.f32 %v671, %v714
    %v716 = vmul.f32 %v672, %v714
    %719 = vrot.lane.b32.xlu0 %v715, 127
    %v720 = vpop.permute.xlu0 %719
    %721 = vrot.lane.b32.xlu0 %v716, 127
    %v722 = vpop.permute.xlu0 %721
    %v725 = vadd.f32 %v686, %v720
    %v726 = vadd.f32 %v687, %v722
    %v727 = vstv %s38
    %v728 = vmul.f32 %v671, %v727
    %v729 = vmul.f32 %v672, %v727
    %732 = vrot.lane.b32.xlu0 %v728, 126
    %v733 = vpop.permute.xlu0 %732
    %734 = vrot.lane.b32.xlu0 %v729, 126
    %v735 = vpop.permute.xlu0 %734
    %v738 = vadd.f32 %v699, %v733
    %v739 = vadd.f32 %v700, %v735
    %v740 = vstv %s65
    %v741 = vmul.f32 %v671, %v740
    %v742 = vmul.f32 %v672, %v740
    %745 = vrot.lane.b32.xlu0 %v741, 126
    %v746 = vpop.permute.xlu0 %745
    %747 = vrot.lane.b32.xlu0 %v742, 126
    %v748 = vpop.permute.xlu0 %747
    %v751 = vadd.f32 %v712, %v746
    %v752 = vadd.f32 %v713, %v748
    %v753 = vstv %s92
    %v754 = vmul.f32 %v671, %v753
    %v755 = vmul.f32 %v672, %v753
    %758 = vrot.lane.b32.xlu0 %v754, 126
    %v759 = vpop.permute.xlu0 %758
    %760 = vrot.lane.b32.xlu0 %v755, 126
    %v761 = vpop.permute.xlu0 %760
    %v764 = vadd.f32 %v725, %v759
    %v765 = vadd.f32 %v726, %v761
    %v766 = vld [vmem:[%s670 + $0x1] sm:$0xff]
    %v767 = vld [vmem:[%s670 + $0x9] sm:$0xff]
    %v768 = vstv %s39
    %v769 = vmul.f32 %v766, %v768
    %v770 = vmul.f32 %v767, %v768
    %v771 = vadd.f32 %v738, %v769
    %v772 = vadd.f32 %v739, %v770
    %v773 = vstv %s66
    %v774 = vmul.f32 %v766, %v773
    %v775 = vmul.f32 %v767, %v773
    %v776 = vadd.f32 %v751, %v774
    %v777 = vadd.f32 %v752, %v775
    %v778 = vstv %s93
    %v779 = vmul.f32 %v766, %v778
    %v780 = vmul.f32 %v767, %v778
    %v781 = vadd.f32 %v764, %v779
    %v782 = vadd.f32 %v765, %v780
    %v783 = vstv %s40
    %v784 = vmul.f32 %v766, %v783
    %v785 = vmul.f32 %v767, %v783
    %788 = vrot.lane.b32.xlu0 %v784, 127
    %v789 = vpop.permute.xlu0 %788
    %790 = vrot.lane.b32.xlu0 %v785, 127
    %v791 = vpop.permute.xlu0 %790
    %v794 = vadd.f32 %v771, %v789
    %v795 = vadd.f32 %v772, %v791
    %v796 = vstv %s67
    %v797 = vmul.f32 %v766, %v796
    %v798 = vmul.f32 %v767, %v796
    %801 = vrot.lane.b32.xlu0 %v797, 127
    %v802 = vpop.permute.xlu0 %801
    %803 = vrot.lane.b32.xlu0 %v798, 127
    %v804 = vpop.permute.xlu0 %803
    %v807 = vadd.f32 %v776, %v802
    %v808 = vadd.f32 %v777, %v804
    %v809 = vstv %s94
    %v810 = vmul.f32 %v766, %v809
    %v811 = vmul.f32 %v767, %v809
    %814 = vrot.lane.b32.xlu0 %v810, 127
    %v815 = vpop.permute.xlu0 %814
    %816 = vrot.lane.b32.xlu0 %v811, 127
    %v817 = vpop.permute.xlu0 %816
    %v820 = vadd.f32 %v781, %v815
    %v821 = vadd.f32 %v782, %v817
    %v822 = vstv %s41
    %v823 = vmul.f32 %v766, %v822
    %v824 = vmul.f32 %v767, %v822
    %827 = vrot.lane.b32.xlu0 %v823, 126
    %v828 = vpop.permute.xlu0 %827
    %829 = vrot.lane.b32.xlu0 %v824, 126
    %v830 = vpop.permute.xlu0 %829
    %v833 = vadd.f32 %v794, %v828
    %v834 = vadd.f32 %v795, %v830
    %v835 = vstv %s68
    %v836 = vmul.f32 %v766, %v835
    %v837 = vmul.f32 %v767, %v835
    %840 = vrot.lane.b32.xlu0 %v836, 126
    %v841 = vpop.permute.xlu0 %840
    %842 = vrot.lane.b32.xlu0 %v837, 126
    %v843 = vpop.permute.xlu0 %842
    %v846 = vadd.f32 %v807, %v841
    %v847 = vadd.f32 %v808, %v843
    %v848 = vstv %s95
    %v849 = vmul.f32 %v766, %v848
    %v850 = vmul.f32 %v767, %v848
    %853 = vrot.lane.b32.xlu0 %v849, 126
    %v854 = vpop.permute.xlu0 %853
    %855 = vrot.lane.b32.xlu0 %v850, 126
    %v856 = vpop.permute.xlu0 %855
    %v859 = vadd.f32 %v820, %v854
    %v860 = vadd.f32 %v821, %v856
    %v861 = vld [vmem:[%s670 + $0x2] sm:$0xff]
    %v862 = vld [vmem:[%s670 + $0xa] sm:$0xff]
    %v863 = vstv %s42
    %v864 = vmul.f32 %v861, %v863
    %v865 = vmul.f32 %v862, %v863
    %v866 = vadd.f32 %v833, %v864
    %v867 = vadd.f32 %v834, %v865
    %v868 = vstv %s69
    %v869 = vmul.f32 %v861, %v868
    %v870 = vmul.f32 %v862, %v868
    %v871 = vadd.f32 %v846, %v869
    %v872 = vadd.f32 %v847, %v870
    %v873 = vstv %s96
    %v874 = vmul.f32 %v861, %v873
    %v875 = vmul.f32 %v862, %v873
    %v876 = vadd.f32 %v859, %v874
    %v877 = vadd.f32 %v860, %v875
    %v878 = vstv %s43
    %v879 = vmul.f32 %v861, %v878
    %v880 = vmul.f32 %v862, %v878
    %883 = vrot.lane.b32.xlu0 %v879, 127
    %v884 = vpop.permute.xlu0 %883
    %885 = vrot.lane.b32.xlu0 %v880, 127
    %v886 = vpop.permute.xlu0 %885
    %v889 = vadd.f32 %v866, %v884
    %v890 = vadd.f32 %v867, %v886
    %v891 = vstv %s70
    %v892 = vmul.f32 %v861, %v891
    %v893 = vmul.f32 %v862, %v891
    %896 = vrot.lane.b32.xlu0 %v892, 127
    %v897 = vpop.permute.xlu0 %896
    %898 = vrot.lane.b32.xlu0 %v893, 127
    %v899 = vpop.permute.xlu0 %898
    %v902 = vadd.f32 %v871, %v897
    %v903 = vadd.f32 %v872, %v899
    %v904 = vstv %s97
    %v905 = vmul.f32 %v861, %v904
    %v906 = vmul.f32 %v862, %v904
    %909 = vrot.lane.b32.xlu0 %v905, 127
    %v910 = vpop.permute.xlu0 %909
    %911 = vrot.lane.b32.xlu0 %v906, 127
    %v912 = vpop.permute.xlu0 %911
    %v915 = vadd.f32 %v876, %v910
    %v916 = vadd.f32 %v877, %v912
    %v917 = vstv %s44
    %v918 = vmul.f32 %v861, %v917
    %v919 = vmul.f32 %v862, %v917
    %922 = vrot.lane.b32.xlu0 %v918, 126
    %v923 = vpop.permute.xlu0 %922
    %924 = vrot.lane.b32.xlu0 %v919, 126
    %v925 = vpop.permute.xlu0 %924
    %v928 = vadd.f32 %v889, %v923
    %v929 = vadd.f32 %v890, %v925
    %v930 = vstv %s71
    %v931 = vmul.f32 %v861, %v930
    %v932 = vmul.f32 %v862, %v930
    %935 = vrot.lane.b32.xlu0 %v931, 126
    %v936 = vpop.permute.xlu0 %935
    %937 = vrot.lane.b32.xlu0 %v932, 126
    %v938 = vpop.permute.xlu0 %937
    %v941 = vadd.f32 %v902, %v936
    %v942 = vadd.f32 %v903, %v938
    %v943 = vstv %s98
    %v944 = vmul.f32 %v861, %v943
    %v945 = vmul.f32 %v862, %v943
    %948 = vrot.lane.b32.xlu0 %v944, 126
    %v949 = vpop.permute.xlu0 %948
    %950 = vrot.lane.b32.xlu0 %v945, 126
    %v951 = vpop.permute.xlu0 %950
    %v954 = vadd.f32 %v915, %v949
    %v955 = vadd.f32 %v916, %v951
    %vm956 = vcmask 130048
    %957 = vst.msk [vmem:[#allocation4] sm:$0xff] %vm956, %v928
    %958 = vst.msk [vmem:[#allocation4 + $0x8] sm:$0xff] %vm956, %v929
    %s959 = scalar_lea.vmem [#allocation4], 16
    %960 = vst.msk [vmem:[%s959] sm:$0xff] %vm956, %v941
    %961 = vst.msk [vmem:[%s959 + $0x8] sm:$0xff] %vm956, %v942
    %s962 = scalar_lea.vmem [#allocation4], 32
    %963 = vst.msk [vmem:[%s962] sm:$0xff] %vm956, %v954
    %964 = vst.msk [vmem:[%s962 + $0x8] sm:$0xff] %vm956, %v955
    %s965 = scalar_lea.vmem %s1, 72
    %v966 = vld [vmem:[%s965] sm:$0xff]
    %v967 = vld [vmem:[%s965 + $0x8] sm:$0xff]
    %v968 = vmul.f32 %v966, %v101
    %v969 = vmul.f32 %v967, %v101
    %v970 = vadd.f32 %v968, 0.0
    %v971 = vadd.f32 %v969, 0.0
    %v972 = vmul.f32 %v966, %v106
    %v973 = vmul.f32 %v967, %v106
    %v974 = vadd.f32 %v972, 0.0
    %v975 = vadd.f32 %v973, 0.0
    %v976 = vmul.f32 %v966, %v111
    %v977 = vmul.f32 %v967, %v111
    %v978 = vadd.f32 %v976, 0.0
    %v979 = vadd.f32 %v977, 0.0
    %v980 = vmul.f32 %v966, %v116
    %v981 = vmul.f32 %v967, %v116
    %984 = vrot.lane.b32.xlu0 %v980, 127
    %v985 = vpop.permute.xlu0 %984
    %986 = vrot.lane.b32.xlu0 %v981, 127
    %v987 = vpop.permute.xlu0 %986
    %v990 = vadd.f32 %v970, %v985
    %v991 = vadd.f32 %v971, %v987
    %v992 = vmul.f32 %v966, %v129
    %v993 = vmul.f32 %v967, %v129
    %996 = vrot.lane.b32.xlu0 %v992, 127
    %v997 = vpop.permute.xlu0 %996
    %998 = vrot.lane.b32.xlu0 %v993, 127
    %v999 = vpop.permute.xlu0 %998
    %v1002 = vadd.f32 %v974, %v997
    %v1003 = vadd.f32 %v975, %v999
    %v1004 = vmul.f32 %v966, %v142
    %v1005 = vmul.f32 %v967, %v142
    %1008 = vrot.lane.b32.xlu0 %v1004, 127
    %v1009 = vpop.permute.xlu0 %1008
    %1010 = vrot.lane.b32.xlu0 %v1005, 127
    %v1011 = vpop.permute.xlu0 %1010
    %v1014 = vadd.f32 %v978, %v1009
    %v1015 = vadd.f32 %v979, %v1011
    %v1016 = vmul.f32 %v966, %v155
    %v1017 = vmul.f32 %v967, %v155
    %1020 = vrot.lane.b32.xlu0 %v1016, 126
    %v1021 = vpop.permute.xlu0 %1020
    %1022 = vrot.lane.b32.xlu0 %v1017, 126
    %v1023 = vpop.permute.xlu0 %1022
    %v1026 = vadd.f32 %v990, %v1021
    %v1027 = vadd.f32 %v991, %v1023
    %v1028 = vmul.f32 %v966, %v168
    %v1029 = vmul.f32 %v967, %v168
    %1032 = vrot.lane.b32.xlu0 %v1028, 126
    %v1033 = vpop.permute.xlu0 %1032
    %1034 = vrot.lane.b32.xlu0 %v1029, 126
    %v1035 = vpop.permute.xlu0 %1034
    %v1038 = vadd.f32 %v1002, %v1033
    %v1039 = vadd.f32 %v1003, %v1035
    %v1040 = vmul.f32 %v966, %v181
    %v1041 = vmul.f32 %v967, %v181
    %1044 = vrot.lane.b32.xlu0 %v1040, 126
    %v1045 = vpop.permute.xlu0 %1044
    %1046 = vrot.lane.b32.xlu0 %v1041, 126
    %v1047 = vpop.permute.xlu0 %1046
    %v1050 = vadd.f32 %v1014, %v1045
    %v1051 = vadd.f32 %v1015, %v1047
    %v1052 = vld [vmem:[%s965 + $0x1] sm:$0xff]
    %v1053 = vld [vmem:[%s965 + $0x9] sm:$0xff]
    %v1054 = vmul.f32 %v1052, %v196
    %v1055 = vmul.f32 %v1053, %v196
    %v1056 = vadd.f32 %v1026, %v1054
    %v1057 = vadd.f32 %v1027, %v1055
    %v1058 = vmul.f32 %v1052, %v201
    %v1059 = vmul.f32 %v1053, %v201
    %v1060 = vadd.f32 %v1038, %v1058
    %v1061 = vadd.f32 %v1039, %v1059
    %v1062 = vmul.f32 %v1052, %v206
    %v1063 = vmul.f32 %v1053, %v206
    %v1064 = vadd.f32 %v1050, %v1062
    %v1065 = vadd.f32 %v1051, %v1063
    %v1066 = vmul.f32 %v1052, %v211
    %v1067 = vmul.f32 %v1053, %v211
    %1070 = vrot.lane.b32.xlu0 %v1066, 127
    %v1071 = vpop.permute.xlu0 %1070
    %1072 = vrot.lane.b32.xlu0 %v1067, 127
    %v1073 = vpop.permute.xlu0 %1072
    %v1076 = vadd.f32 %v1056, %v1071
    %v1077 = vadd.f32 %v1057, %v1073
    %v1078 = vmul.f32 %v1052, %v224
    %v1079 = vmul.f32 %v1053, %v224
    %1082 = vrot.lane.b32.xlu0 %v1078, 127
    %v1083 = vpop.permute.xlu0 %1082
    %1084 = vrot.lane.b32.xlu0 %v1079, 127
    %v1085 = vpop.permute.xlu0 %1084
    %v1088 = vadd.f32 %v1060, %v1083
    %v1089 = vadd.f32 %v1061, %v1085
    %v1090 = vmul.f32 %v1052, %v237
    %v1091 = vmul.f32 %v1053, %v237
    %1094 = vrot.lane.b32.xlu0 %v1090, 127
    %v1095 = vpop.permute.xlu0 %1094
    %1096 = vrot.lane.b32.xlu0 %v1091, 127
    %v1097 = vpop.permute.xlu0 %1096
    %v1100 = vadd.f32 %v1064, %v1095
    %v1101 = vadd.f32 %v1065, %v1097
    %v1102 = vmul.f32 %v1052, %v250
    %v1103 = vmul.f32 %v1053, %v250
    %1106 = vrot.lane.b32.xlu0 %v1102, 126
    %v1107 = vpop.permute.xlu0 %1106
    %1108 = vrot.lane.b32.xlu0 %v1103, 126
    %v1109 = vpop.permute.xlu0 %1108
    %v1112 = vadd.f32 %v1076, %v1107
    %v1113 = vadd.f32 %v1077, %v1109
    %v1114 = vmul.f32 %v1052, %v263
    %v1115 = vmul.f32 %v1053, %v263
    %1118 = vrot.lane.b32.xlu0 %v1114, 126
    %v1119 = vpop.permute.xlu0 %1118
    %1120 = vrot.lane.b32.xlu0 %v1115, 126
    %v1121 = vpop.permute.xlu0 %1120
    %v1124 = vadd.f32 %v1088, %v1119
    %v1125 = vadd.f32 %v1089, %v1121
    %v1126 = vmul.f32 %v1052, %v276
    %v1127 = vmul.f32 %v1053, %v276
    %1130 = vrot.lane.b32.xlu0 %v1126, 126
    %v1131 = vpop.permute.xlu0 %1130
    %1132 = vrot.lane.b32.xlu0 %v1127, 126
    %v1133 = vpop.permute.xlu0 %1132
    %v1136 = vadd.f32 %v1100, %v1131
    %v1137 = vadd.f32 %v1101, %v1133
    %v1138 = vld [vmem:[%s965 + $0x2] sm:$0xff]
    %v1139 = vld [vmem:[%s965 + $0xa] sm:$0xff]
    %v1140 = vmul.f32 %v1138, %v291
    %v1141 = vmul.f32 %v1139, %v291
    %v1142 = vadd.f32 %v1112, %v1140
    %v1143 = vadd.f32 %v1113, %v1141
    %v1144 = vmul.f32 %v1138, %v296
    %v1145 = vmul.f32 %v1139, %v296
    %v1146 = vadd.f32 %v1124, %v1144
    %v1147 = vadd.f32 %v1125, %v1145
    %v1148 = vmul.f32 %v1138, %v301
    %v1149 = vmul.f32 %v1139, %v301
    %v1150 = vadd.f32 %v1136, %v1148
    %v1151 = vadd.f32 %v1137, %v1149
    %v1152 = vmul.f32 %v1138, %v306
    %v1153 = vmul.f32 %v1139, %v306
    %1156 = vrot.lane.b32.xlu0 %v1152, 127
    %v1157 = vpop.permute.xlu0 %1156
    %1158 = vrot.lane.b32.xlu0 %v1153, 127
    %v1159 = vpop.permute.xlu0 %1158
    %v1162 = vadd.f32 %v1142, %v1157
    %v1163 = vadd.f32 %v1143, %v1159
    %v1164 = vmul.f32 %v1138, %v319
    %v1165 = vmul.f32 %v1139, %v319
    %1168 = vrot.lane.b32.xlu0 %v1164, 127
    %v1169 = vpop.permute.xlu0 %1168
    %1170 = vrot.lane.b32.xlu0 %v1165, 127
    %v1171 = vpop.permute.xlu0 %1170
    %v1174 = vadd.f32 %v1146, %v1169
    %v1175 = vadd.f32 %v1147, %v1171
    %v1176 = vmul.f32 %v1138, %v332
    %v1177 = vmul.f32 %v1139, %v332
    %1180 = vrot.lane.b32.xlu0 %v1176, 127
    %v1181 = vpop.permute.xlu0 %1180
    %1182 = vrot.lane.b32.xlu0 %v1177, 127
    %v1183 = vpop.permute.xlu0 %1182
    %v1186 = vadd.f32 %v1150, %v1181
    %v1187 = vadd.f32 %v1151, %v1183
    %v1188 = vmul.f32 %v1138, %v345
    %v1189 = vmul.f32 %v1139, %v345
    %1192 = vrot.lane.b32.xlu0 %v1188, 126
    %v1193 = vpop.permute.xlu0 %1192
    %1194 = vrot.lane.b32.xlu0 %v1189, 126
    %v1195 = vpop.permute.xlu0 %1194
    %v1198 = vadd.f32 %v1162, %v1193
    %v1199 = vadd.f32 %v1163, %v1195
    %v1200 = vmul.f32 %v1138, %v358
    %v1201 = vmul.f32 %v1139, %v358
    %1204 = vrot.lane.b32.xlu0 %v1200, 126
    %v1205 = vpop.permute.xlu0 %1204
    %1206 = vrot.lane.b32.xlu0 %v1201, 126
    %v1207 = vpop.permute.xlu0 %1206
    %v1210 = vadd.f32 %v1174, %v1205
    %v1211 = vadd.f32 %v1175, %v1207
    %v1212 = vmul.f32 %v1138, %v371
    %v1213 = vmul.f32 %v1139, %v371
    %1216 = vrot.lane.b32.xlu0 %v1212, 126
    %v1217 = vpop.permute.xlu0 %1216
    %1218 = vrot.lane.b32.xlu0 %v1213, 126
    %v1219 = vpop.permute.xlu0 %1218
    %v1222 = vadd.f32 %v1186, %v1217
    %v1223 = vadd.f32 %v1187, %v1219
    %s1224 = scalar_lea.vmem %s1, 96
    %v1225 = vld [vmem:[%s1224] sm:$0xff]
    %v1226 = vld [vmem:[%s1224 + $0x8] sm:$0xff]
    %v1227 = vmul.f32 %v1225, %v387
    %v1228 = vmul.f32 %v1226, %v387
    %v1229 = vadd.f32 %v1198, %v1227
    %v1230 = vadd.f32 %v1199, %v1228
    %v1231 = vmul.f32 %v1225, %v392
    %v1232 = vmul.f32 %v1226, %v392
    %v1233 = vadd.f32 %v1210, %v1231
    %v1234 = vadd.f32 %v1211, %v1232
    %v1235 = vmul.f32 %v1225, %v397
    %v1236 = vmul.f32 %v1226, %v397
    %v1237 = vadd.f32 %v1222, %v1235
    %v1238 = vadd.f32 %v1223, %v1236
    %v1239 = vmul.f32 %v1225, %v402
    %v1240 = vmul.f32 %v1226, %v402
    %1243 = vrot.lane.b32.xlu0 %v1239, 127
    %v1244 = vpop.permute.xlu0 %1243
    %1245 = vrot.lane.b32.xlu0 %v1240, 127
    %v1246 = vpop.permute.xlu0 %1245
    %v1249 = vadd.f32 %v1229, %v1244
    %v1250 = vadd.f32 %v1230, %v1246
    %v1251 = vmul.f32 %v1225, %v415
    %v1252 = vmul.f32 %v1226, %v415
    %1255 = vrot.lane.b32.xlu0 %v1251, 127
    %v1256 = vpop.permute.xlu0 %1255
    %1257 = vrot.lane.b32.xlu0 %v1252, 127
    %v1258 = vpop.permute.xlu0 %1257
    %v1261 = vadd.f32 %v1233, %v1256
    %v1262 = vadd.f32 %v1234, %v1258
    %v1263 = vmul.f32 %v1225, %v428
    %v1264 = vmul.f32 %v1226, %v428
    %1267 = vrot.lane.b32.xlu0 %v1263, 127
    %v1268 = vpop.permute.xlu0 %1267
    %1269 = vrot.lane.b32.xlu0 %v1264, 127
    %v1270 = vpop.permute.xlu0 %1269
    %v1273 = vadd.f32 %v1237, %v1268
    %v1274 = vadd.f32 %v1238, %v1270
    %v1275 = vmul.f32 %v1225, %v441
    %v1276 = vmul.f32 %v1226, %v441
    %1279 = vrot.lane.b32.xlu0 %v1275, 126
    %v1280 = vpop.permute.xlu0 %1279
    %1281 = vrot.lane.b32.xlu0 %v1276, 126
    %v1282 = vpop.permute.xlu0 %1281
    %v1285 = vadd.f32 %v1249, %v1280
    %v1286 = vadd.f32 %v1250, %v1282
    %v1287 = vmul.f32 %v1225, %v454
    %v1288 = vmul.f32 %v1226, %v454
    %1291 = vrot.lane.b32.xlu0 %v1287, 126
    %v1292 = vpop.permute.xlu0 %1291
    %1293 = vrot.lane.b32.xlu0 %v1288, 126
    %v1294 = vpop.permute.xlu0 %1293
    %v1297 = vadd.f32 %v1261, %v1292
    %v1298 = vadd.f32 %v1262, %v1294
    %v1299 = vmul.f32 %v1225, %v467
    %v1300 = vmul.f32 %v1226, %v467
    %1303 = vrot.lane.b32.xlu0 %v1299, 126
    %v1304 = vpop.permute.xlu0 %1303
    %1305 = vrot.lane.b32.xlu0 %v1300, 126
    %v1306 = vpop.permute.xlu0 %1305
    %v1309 = vadd.f32 %v1273, %v1304
    %v1310 = vadd.f32 %v1274, %v1306
    %v1311 = vld [vmem:[%s1224 + $0x1] sm:$0xff]
    %v1312 = vld [vmem:[%s1224 + $0x9] sm:$0xff]
    %v1313 = vmul.f32 %v1311, %v482
    %v1314 = vmul.f32 %v1312, %v482
    %v1315 = vadd.f32 %v1285, %v1313
    %v1316 = vadd.f32 %v1286, %v1314
    %v1317 = vmul.f32 %v1311, %v487
    %v1318 = vmul.f32 %v1312, %v487
    %v1319 = vadd.f32 %v1297, %v1317
    %v1320 = vadd.f32 %v1298, %v1318
    %v1321 = vmul.f32 %v1311, %v492
    %v1322 = vmul.f32 %v1312, %v492
    %v1323 = vadd.f32 %v1309, %v1321
    %v1324 = vadd.f32 %v1310, %v1322
    %v1325 = vmul.f32 %v1311, %v497
    %v1326 = vmul.f32 %v1312, %v497
    %1329 = vrot.lane.b32.xlu0 %v1325, 127
    %v1330 = vpop.permute.xlu0 %1329
    %1331 = vrot.lane.b32.xlu0 %v1326, 127
    %v1332 = vpop.permute.xlu0 %1331
    %v1335 = vadd.f32 %v1315, %v1330
    %v1336 = vadd.f32 %v1316, %v1332
    %v1337 = vmul.f32 %v1311, %v510
    %v1338 = vmul.f32 %v1312, %v510
    %1341 = vrot.lane.b32.xlu0 %v1337, 127
    %v1342 = vpop.permute.xlu0 %1341
    %1343 = vrot.lane.b32.xlu0 %v1338, 127
    %v1344 = vpop.permute.xlu0 %1343
    %v1347 = vadd.f32 %v1319, %v1342
    %v1348 = vadd.f32 %v1320, %v1344
    %v1349 = vmul.f32 %v1311, %v523
    %v1350 = vmul.f32 %v1312, %v523
    %1353 = vrot.lane.b32.xlu0 %v1349, 127
    %v1354 = vpop.permute.xlu0 %1353
    %1355 = vrot.lane.b32.xlu0 %v1350, 127
    %v1356 = vpop.permute.xlu0 %1355
    %v1359 = vadd.f32 %v1323, %v1354
    %v1360 = vadd.f32 %v1324, %v1356
    %v1361 = vmul.f32 %v1311, %v536
    %v1362 = vmul.f32 %v1312, %v536
    %1365 = vrot.lane.b32.xlu0 %v1361, 126
    %v1366 = vpop.permute.xlu0 %1365
    %1367 = vrot.lane.b32.xlu0 %v1362, 126
    %v1368 = vpop.permute.xlu0 %1367
    %v1371 = vadd.f32 %v1335, %v1366
    %v1372 = vadd.f32 %v1336, %v1368
    %v1373 = vmul.f32 %v1311, %v549
    %v1374 = vmul.f32 %v1312, %v549
    %1377 = vrot.lane.b32.xlu0 %v1373, 126
    %v1378 = vpop.permute.xlu0 %1377
    %1379 = vrot.lane.b32.xlu0 %v1374, 126
    %v1380 = vpop.permute.xlu0 %1379
    %v1383 = vadd.f32 %v1347, %v1378
    %v1384 = vadd.f32 %v1348, %v1380
    %v1385 = vmul.f32 %v1311, %v562
    %v1386 = vmul.f32 %v1312, %v562
    %1389 = vrot.lane.b32.xlu0 %v1385, 126
    %v1390 = vpop.permute.xlu0 %1389
    %1391 = vrot.lane.b32.xlu0 %v1386, 126
    %v1392 = vpop.permute.xlu0 %1391
    %v1395 = vadd.f32 %v1359, %v1390
    %v1396 = vadd.f32 %v1360, %v1392
    %v1397 = vld [vmem:[%s1224 + $0x2] sm:$0xff]
    %v1398 = vld [vmem:[%s1224 + $0xa] sm:$0xff]
    %v1399 = vmul.f32 %v1397, %v577
    %v1400 = vmul.f32 %v1398, %v577
    %v1401 = vadd.f32 %v1371, %v1399
    %v1402 = vadd.f32 %v1372, %v1400
    %v1403 = vmul.f32 %v1397, %v582
    %v1404 = vmul.f32 %v1398, %v582
    %v1405 = vadd.f32 %v1383, %v1403
    %v1406 = vadd.f32 %v1384, %v1404
    %v1407 = vmul.f32 %v1397, %v587
    %v1408 = vmul.f32 %v1398, %v587
    %v1409 = vadd.f32 %v1395, %v1407
    %v1410 = vadd.f32 %v1396, %v1408
    %v1411 = vmul.f32 %v1397, %v592
    %v1412 = vmul.f32 %v1398, %v592
    %1415 = vrot.lane.b32.xlu0 %v1411, 127
    %v1416 = vpop.permute.xlu0 %1415
    %1417 = vrot.lane.b32.xlu0 %v1412, 127
    %v1418 = vpop.permute.xlu0 %1417
    %v1421 = vadd.f32 %v1401, %v1416
    %v1422 = vadd.f32 %v1402, %v1418
    %v1423 = vmul.f32 %v1397, %v605
    %v1424 = vmul.f32 %v1398, %v605
    %1427 = vrot.lane.b32.xlu0 %v1423, 127
    %v1428 = vpop.permute.xlu0 %1427
    %1429 = vrot.lane.b32.xlu0 %v1424, 127
    %v1430 = vpop.permute.xlu0 %1429
    %v1433 = vadd.f32 %v1405, %v1428
    %v1434 = vadd.f32 %v1406, %v1430
    %v1435 = vmul.f32 %v1397, %v618
    %v1436 = vmul.f32 %v1398, %v618
    %1439 = vrot.lane.b32.xlu0 %v1435, 127
    %v1440 = vpop.permute.xlu0 %1439
    %1441 = vrot.lane.b32.xlu0 %v1436, 127
    %v1442 = vpop.permute.xlu0 %1441
    %v1445 = vadd.f32 %v1409, %v1440
    %v1446 = vadd.f32 %v1410, %v1442
    %v1447 = vmul.f32 %v1397, %v631
    %v1448 = vmul.f32 %v1398, %v631
    %1451 = vrot.lane.b32.xlu0 %v1447, 126
    %v1452 = vpop.permute.xlu0 %1451
    %1453 = vrot.lane.b32.xlu0 %v1448, 126
    %v1454 = vpop.permute.xlu0 %1453
    %v1457 = vadd.f32 %v1421, %v1452
    %v1458 = vadd.f32 %v1422, %v1454
    %v1459 = vmul.f32 %v1397, %v644
    %v1460 = vmul.f32 %v1398, %v644
    %1463 = vrot.lane.b32.xlu0 %v1459, 126
    %v1464 = vpop.permute.xlu0 %1463
    %1465 = vrot.lane.b32.xlu0 %v1460, 126
    %v1466 = vpop.permute.xlu0 %1465
    %v1469 = vadd.f32 %v1433, %v1464
    %v1470 = vadd.f32 %v1434, %v1466
    %v1471 = vmul.f32 %v1397, %v657
    %v1472 = vmul.f32 %v1398, %v657
    %1475 = vrot.lane.b32.xlu0 %v1471, 126
    %v1476 = vpop.permute.xlu0 %1475
    %1477 = vrot.lane.b32.xlu0 %v1472, 126
    %v1478 = vpop.permute.xlu0 %1477
    %v1481 = vadd.f32 %v1445, %v1476
    %v1482 = vadd.f32 %v1446, %v1478
    %s1483 = scalar_lea.vmem %s1, 120
    %v1484 = vld [vmem:[%s1483] sm:$0xff]
    %v1485 = vld [vmem:[%s1483 + $0x8] sm:$0xff]
    %v1486 = vmul.f32 %v1484, %v673
    %v1487 = vmul.f32 %v1485, %v673
    %v1488 = vadd.f32 %v1457, %v1486
    %v1489 = vadd.f32 %v1458, %v1487
    %v1490 = vmul.f32 %v1484, %v678
    %v1491 = vmul.f32 %v1485, %v678
    %v1492 = vadd.f32 %v1469, %v1490
    %v1493 = vadd.f32 %v1470, %v1491
    %v1494 = vmul.f32 %v1484, %v683
    %v1495 = vmul.f32 %v1485, %v683
    %v1496 = vadd.f32 %v1481, %v1494
    %v1497 = vadd.f32 %v1482, %v1495
    %v1498 = vmul.f32 %v1484, %v688
    %v1499 = vmul.f32 %v1485, %v688
    %1502 = vrot.lane.b32.xlu0 %v1498, 127
    %v1503 = vpop.permute.xlu0 %1502
    %1504 = vrot.lane.b32.xlu0 %v1499, 127
    %v1505 = vpop.permute.xlu0 %1504
    %v1508 = vadd.f32 %v1488, %v1503
    %v1509 = vadd.f32 %v1489, %v1505
    %v1510 = vmul.f32 %v1484, %v701
    %v1511 = vmul.f32 %v1485, %v701
    %1514 = vrot.lane.b32.xlu0 %v1510, 127
    %v1515 = vpop.permute.xlu0 %1514
    %1516 = vrot.lane.b32.xlu0 %v1511, 127
    %v1517 = vpop.permute.xlu0 %1516
    %v1520 = vadd.f32 %v1492, %v1515
    %v1521 = vadd.f32 %v1493, %v1517
    %v1522 = vmul.f32 %v1484, %v714
    %v1523 = vmul.f32 %v1485, %v714
    %1526 = vrot.lane.b32.xlu0 %v1522, 127
    %v1527 = vpop.permute.xlu0 %1526
    %1528 = vrot.lane.b32.xlu0 %v1523, 127
    %v1529 = vpop.permute.xlu0 %1528
    %v1532 = vadd.f32 %v1496, %v1527
    %v1533 = vadd.f32 %v1497, %v1529
    %v1534 = vmul.f32 %v1484, %v727
    %v1535 = vmul.f32 %v1485, %v727
    %1538 = vrot.lane.b32.xlu0 %v1534, 126
    %v1539 = vpop.permute.xlu0 %1538
    %1540 = vrot.lane.b32.xlu0 %v1535, 126
    %v1541 = vpop.permute.xlu0 %1540
    %v1544 = vadd.f32 %v1508, %v1539
    %v1545 = vadd.f32 %v1509, %v1541
    %v1546 = vmul.f32 %v1484, %v740
    %v1547 = vmul.f32 %v1485, %v740
    %1550 = vrot.lane.b32.xlu0 %v1546, 126
    %v1551 = vpop.permute.xlu0 %1550
    %1552 = vrot.lane.b32.xlu0 %v1547, 126
    %v1553 = vpop.permute.xlu0 %1552
    %v1556 = vadd.f32 %v1520, %v1551
    %v1557 = vadd.f32 %v1521, %v1553
    %v1558 = vmul.f32 %v1484, %v753
    %v1559 = vmul.f32 %v1485, %v753
    %1562 = vrot.lane.b32.xlu0 %v1558, 126
    %v1563 = vpop.permute.xlu0 %1562
    %1564 = vrot.lane.b32.xlu0 %v1559, 126
    %v1565 = vpop.permute.xlu0 %1564
    %v1568 = vadd.f32 %v1532, %v1563
    %v1569 = vadd.f32 %v1533, %v1565
    %v1570 = vld [vmem:[%s1483 + $0x1] sm:$0xff]
    %v1571 = vld [vmem:[%s1483 + $0x9] sm:$0xff]
    %v1572 = vmul.f32 %v1570, %v768
    %v1573 = vmul.f32 %v1571, %v768
    %v1574 = vadd.f32 %v1544, %v1572
    %v1575 = vadd.f32 %v1545, %v1573
    %v1576 = vmul.f32 %v1570, %v773
    %v1577 = vmul.f32 %v1571, %v773
    %v1578 = vadd.f32 %v1556, %v1576
    %v1579 = vadd.f32 %v1557, %v1577
    %v1580 = vmul.f32 %v1570, %v778
    %v1581 = vmul.f32 %v1571, %v778
    %v1582 = vadd.f32 %v1568, %v1580
    %v1583 = vadd.f32 %v1569, %v1581
    %v1584 = vmul.f32 %v1570, %v783
    %v1585 = vmul.f32 %v1571, %v783
    %1588 = vrot.lane.b32.xlu0 %v1584, 127
    %v1589 = vpop.permute.xlu0 %1588
    %1590 = vrot.lane.b32.xlu0 %v1585, 127
    %v1591 = vpop.permute.xlu0 %1590
    %v1594 = vadd.f32 %v1574, %v1589
    %v1595 = vadd.f32 %v1575, %v1591
    %v1596 = vmul.f32 %v1570, %v796
    %v1597 = vmul.f32 %v1571, %v796
    %1600 = vrot.lane.b32.xlu0 %v1596, 127
    %v1601 = vpop.permute.xlu0 %1600
    %1602 = vrot.lane.b32.xlu0 %v1597, 127
    %v1603 = vpop.permute.xlu0 %1602
    %v1606 = vadd.f32 %v1578, %v1601
    %v1607 = vadd.f32 %v1579, %v1603
    %v1608 = vmul.f32 %v1570, %v809
    %v1609 = vmul.f32 %v1571, %v809
    %1612 = vrot.lane.b32.xlu0 %v1608, 127
    %v1613 = vpop.permute.xlu0 %1612
    %1614 = vrot.lane.b32.xlu0 %v1609, 127
    %v1615 = vpop.permute.xlu0 %1614
    %v1618 = vadd.f32 %v1582, %v1613
    %v1619 = vadd.f32 %v1583, %v1615
    %v1620 = vmul.f32 %v1570, %v822
    %v1621 = vmul.f32 %v1571, %v822
    %1624 = vrot.lane.b32.xlu0 %v1620, 126
    %v1625 = vpop.permute.xlu0 %1624
    %1626 = vrot.lane.b32.xlu0 %v1621, 126
    %v1627 = vpop.permute.xlu0 %1626
    %v1630 = vadd.f32 %v1594, %v1625
    %v1631 = vadd.f32 %v1595, %v1627
    %v1632 = vmul.f32 %v1570, %v835
    %v1633 = vmul.f32 %v1571, %v835
    %1636 = vrot.lane.b32.xlu0 %v1632, 126
    %v1637 = vpop.permute.xlu0 %1636
    %1638 = vrot.lane.b32.xlu0 %v1633, 126
    %v1639 = vpop.permute.xlu0 %1638
    %v1642 = vadd.f32 %v1606, %v1637
    %v1643 = vadd.f32 %v1607, %v1639
    %v1644 = vmul.f32 %v1570, %v848
    %v1645 = vmul.f32 %v1571, %v848
    %1648 = vrot.lane.b32.xlu0 %v1644, 126
    %v1649 = vpop.permute.xlu0 %1648
    %1650 = vrot.lane.b32.xlu0 %v1645, 126
    %v1651 = vpop.permute.xlu0 %1650
    %v1654 = vadd.f32 %v1618, %v1649
    %v1655 = vadd.f32 %v1619, %v1651
    %v1656 = vld [vmem:[%s1483 + $0x2] sm:$0xff]
    %v1657 = vld [vmem:[%s1483 + $0xa] sm:$0xff]
    %v1658 = vmul.f32 %v1656, %v863
    %v1659 = vmul.f32 %v1657, %v863
    %v1660 = vadd.f32 %v1630, %v1658
    %v1661 = vadd.f32 %v1631, %v1659
    %v1662 = vmul.f32 %v1656, %v868
    %v1663 = vmul.f32 %v1657, %v868
    %v1664 = vadd.f32 %v1642, %v1662
    %v1665 = vadd.f32 %v1643, %v1663
    %v1666 = vmul.f32 %v1656, %v873
    %v1667 = vmul.f32 %v1657, %v873
    %v1668 = vadd.f32 %v1654, %v1666
    %v1669 = vadd.f32 %v1655, %v1667
    %v1670 = vmul.f32 %v1656, %v878
    %v1671 = vmul.f32 %v1657, %v878
    %1674 = vrot.lane.b32.xlu0 %v1670, 127
    %v1675 = vpop.permute.xlu0 %1674
    %1676 = vrot.lane.b32.xlu0 %v1671, 127
    %v1677 = vpop.permute.xlu0 %1676
    %v1680 = vadd.f32 %v1660, %v1675
    %v1681 = vadd.f32 %v1661, %v1677
    %v1682 = vmul.f32 %v1656, %v891
    %v1683 = vmul.f32 %v1657, %v891
    %1686 = vrot.lane.b32.xlu0 %v1682, 127
    %v1687 = vpop.permute.xlu0 %1686
    %1688 = vrot.lane.b32.xlu0 %v1683, 127
    %v1689 = vpop.permute.xlu0 %1688
    %v1692 = vadd.f32 %v1664, %v1687
    %v1693 = vadd.f32 %v1665, %v1689
    %v1694 = vmul.f32 %v1656, %v904
    %v1695 = vmul.f32 %v1657, %v904
    %1698 = vrot.lane.b32.xlu0 %v1694, 127
    %v1699 = vpop.permute.xlu0 %1698
    %1700 = vrot.lane.b32.xlu0 %v1695, 127
    %v1701 = vpop.permute.xlu0 %1700
    %v1704 = vadd.f32 %v1668, %v1699
    %v1705 = vadd.f32 %v1669, %v1701
    %v1706 = vmul.f32 %v1656, %v917
    %v1707 = vmul.f32 %v1657, %v917
    %1710 = vrot.lane.b32.xlu0 %v1706, 126
    %v1711 = vpop.permute.xlu0 %1710
    %1712 = vrot.lane.b32.xlu0 %v1707, 126
    %v1713 = vpop.permute.xlu0 %1712
    %v1716 = vadd.f32 %v1680, %v1711
    %v1717 = vadd.f32 %v1681, %v1713
    %v1718 = vmul.f32 %v1656, %v930
    %v1719 = vmul.f32 %v1657, %v930
    %1722 = vrot.lane.b32.xlu0 %v1718, 126
    %v1723 = vpop.permute.xlu0 %1722
    %1724 = vrot.lane.b32.xlu0 %v1719, 126
    %v1725 = vpop.permute.xlu0 %1724
    %v1728 = vadd.f32 %v1692, %v1723
    %v1729 = vadd.f32 %v1693, %v1725
    %v1730 = vmul.f32 %v1656, %v943
    %v1731 = vmul.f32 %v1657, %v943
    %1734 = vrot.lane.b32.xlu0 %v1730, 126
    %v1735 = vpop.permute.xlu0 %1734
    %1736 = vrot.lane.b32.xlu0 %v1731, 126
    %v1737 = vpop.permute.xlu0 %1736
    %v1740 = vadd.f32 %v1704, %v1735
    %v1741 = vadd.f32 %v1705, %v1737
    %s1742 = scalar_lea.vmem [#allocation4], 48
    %1743 = vst.msk [vmem:[%s1742] sm:$0xff] %vm956, %v1716
    %1744 = vst.msk [vmem:[%s1742 + $0x8] sm:$0xff] %vm956, %v1717
    %s1745 = scalar_lea.vmem [#allocation4], 64
    %1746 = vst.msk [vmem:[%s1745] sm:$0xff] %vm956, %v1728
    %1747 = vst.msk [vmem:[%s1745 + $0x8] sm:$0xff] %vm956, %v1729
    %s1748 = scalar_lea.vmem [#allocation4], 80
    %1749 = vst.msk [vmem:[%s1748] sm:$0xff] %vm956, %v1740
    %1750 = vst.msk [vmem:[%s1748 + $0x8] sm:$0xff] %vm956, %v1741
    // Predicated region
    $region6: #{bconv_module_forward.1} parent=1 // pred_check
      _
    $region7: #{bconv_module_forward.1} parent=1 // pred_check_branch
      %1752 = sbr.rel (0) target = $region9
    $region8: #{bconv_module_forward.1} parent=1 // pred_region
      %1754 = vsyncadd [#allocation5], 0
      %s1755 = sshll.u32 [#allocation4], 4
      %s1756 = int_to_ptr.vmem [resolvable:$true] %s1755
      %s1757 = sshll.u32 %s2, 4
      %s1758 = int_to_ptr.hbm [resolvable:$true] %s1757
      %1763 = dma.vmem_to_hbm [thread:$0]  %s1756, 1536, %s1758, [#allocation5], 128, 128, 8
    $region9: #{bconv_module_forward.1} parent=1 // pred_fallthru
      _
    // Predicated region
    $region10: #{bconv_module_forward.1} parent=1 // pred_check
      _
    $region11: #{bconv_module_forward.1} parent=1 // pred_check_branch
      %1765 = sbr.rel (0) target = $region13
    $region12: #{bconv_module_forward.1} parent=1 // pred_region
      %1767 = dma.done [#allocation5], 1536
    $region13: #{bconv_module_forward.1} parent=1 // pred_fallthru
      _
    %1768 = vsyncpa [#allocation5], 1

</llo_original>
